<compile_context>
chip_gen: v6e
topology: v6e:2x2x1
jax: 0.10.0
libtpu: 0.0.40
codegen_flags: <defaults>
</compile_context>

<pallas_src>
import jax
import jax.numpy as jnp
from jax.experimental import pallas as pl
from jax.experimental.pallas import tpu as pltpu


_LANES = 128
_EPS = 1e-5            # nn.LayerNorm default eps


def _round_up(x, m):
    return (x + m - 1) // m * m


def _make_kernel(n_true, k_true, tk, kt, np_padded, add_norm):
    """Fused (tiled-K) linear + optional layernorm + silu on one row tile."""
    inv_n = 1.0 / float(n_true)
    mask_k = (kt * tk) > k_true                  # last K tile reads past K
    mask_n = add_norm and (np_padded > n_true)   # padded output lanes exist
    use_acc = kt > 1

    def kernel(*refs):
        if add_norm:
            x_ref, w_ref, b_ref, g_ref, bt_ref, o_ref = refs[:6]
        else:
            x_ref, w_ref, b_ref, o_ref = refs[:4]
            g_ref = bt_ref = None
        acc_ref = refs[-1] if use_acc else None

        k = pl.program_id(1)

        # Load f32 activations, mask lanes beyond the true K (last partial K
        # tile holds undefined data), cast to bf16 for the MXU.
        xf = x_ref[...]
        if mask_k:
            kidx = k * tk + jax.lax.broadcasted_iota(jnp.int32, xf.shape, 1)
            xf = jnp.where(kidx < k_true, xf, 0.0)
        part = jnp.dot(xf.astype(jnp.bfloat16), w_ref[...],
                       preferred_element_type=jnp.float32)

        def finalize(y):
            y = y + b_ref[...]                               # bias broadcast
            if add_norm:
                # Two-pass LayerNorm over the true width n_true. Padded output
                # lanes are exactly zero (zero-padded W columns, zero bias), so
                # the mean is exact; the centered term is masked before the
                # second moment so padded lanes don't contribute -mu.
                mu = jnp.sum(y, axis=-1, keepdims=True) * inv_n
                d = y - mu
                if mask_n:
                    lane = jax.lax.broadcasted_iota(jnp.int32, y.shape, 1)
                    d = jnp.where(lane < n_true, d, 0.0)
                var = jnp.sum(d * d, axis=-1, keepdims=True) * inv_n
                y = d * jax.lax.rsqrt(var + _EPS) * g_ref[...] + bt_ref[...]
            y = y * jax.nn.sigmoid(y)                        # SiLU (EUP)
            o_ref[...] = y.astype(o_ref.dtype)

        if use_acc:
            @pl.when(k == 0)
            def _():
                acc_ref[...] = jnp.zeros_like(acc_ref)

            acc_ref[...] += part

            @pl.when(k == kt - 1)
            def _():
                finalize(acc_ref[...])
        else:
            finalize(part)

    return kernel


def prepare_params(W, b, gamma=None, beta=None, *, k_tile=512,
                   k_resident_max=1024):
    """One-time padding / bf16 cast of the layer parameters.

    W: [K, N], b: [N], gamma/beta: [N] or None (add_norm=False).
    k_tile must be a multiple of 256 (full MXU contraction depth on v6e/v7x).
    """
    K, N = W.shape
    Np = _round_up(N, _LANES)
    if K <= k_resident_max:
        tk = K                       # whole contraction resident, no K grid
    else:
        assert k_tile % 256 == 0, "use a K tile that is a multiple of 256"
        tk = k_tile
    Kp = _round_up(K, tk)
    kt = Kp // tk

    Wp = jnp.zeros((Kp, Np), jnp.bfloat16).at[:K, :N].set(W.astype(jnp.bfloat16))
    bp = jnp.zeros((1, Np), jnp.float32).at[0, :N].set(b.astype(jnp.float32))
    params = dict(W=Wp, b=bp, K=K, N=N, Np=Np, tk=tk, kt=kt,
                  add_norm=gamma is not None)
    if gamma is not None:
        params["gamma"] = jnp.zeros((1, Np), jnp.float32).at[0, :N].set(
            gamma.astype(jnp.float32))
        params["beta"] = jnp.zeros((1, Np), jnp.float32).at[0, :N].set(
            beta.astype(jnp.float32))
    return params


def _pick_block_rows(M):
    # Target 512-row tiles, but always keep >=2 row grid steps (v7x megacore)
    # and a multiple of 8 (sublane alignment).
    return min(512, max(8, _round_up(pl.cdiv(M, 2), 8)))


def linear_layer(x, params, *, block_rows=None, out_dtype=jnp.float32):
    """Forward of LinearLayer: silu(layernorm(x @ W + b)).

    x: [M, K] (f32 or bf16, consumed as-is), params from prepare_params.
    Returns [M, N] in out_dtype.
    """
    M, K = x.shape
    assert K == params["K"], (K, params["K"])
    N, Np, tk, kt = params["N"], params["Np"], params["tk"], params["kt"]
    add_norm = params["add_norm"]

    if block_rows is None:
        block_rows = _pick_block_rows(M)
    else:
        block_rows = max(8, _round_up(block_rows, 8))
    row_tiles = pl.cdiv(M, block_rows)

    in_specs = [
        pl.BlockSpec((block_rows, tk), lambda i, k: (i, k)),   # x tile
        pl.BlockSpec((tk, Np), lambda i, k: (k, 0)),           # W K-slab
        pl.BlockSpec((1, Np), lambda i, k: (0, 0)),            # bias (resident)
    ]
    args = [x, params["W"], params["b"]]
    if add_norm:
        in_specs += [pl.BlockSpec((1, Np), lambda i, k: (0, 0)),
                     pl.BlockSpec((1, Np), lambda i, k: (0, 0))]
        args += [params["gamma"], params["beta"]]

    scratch = [pltpu.VMEM((block_rows, Np), jnp.float32)] if kt > 1 else []

    # Derived VMEM budget: double-buffered x / W / params / out + accumulator.
    out_bytes = jnp.dtype(out_dtype).itemsize
    n_vec_params = 3 if add_norm else 1
    need = (2 * block_rows * tk * jnp.dtype(x.dtype).itemsize
            + 2 * tk * Np * 2
            + 2 * n_vec_params * Np * 4
            + 2 * block_rows * Np * out_bytes
            + (block_rows * Np * 4 if kt > 1 else 0))
    try:
        cap = int(pltpu.get_tpu_info().vmem_capacity_bytes) * 3 // 4
    except Exception:
        cap = 48 * 1024 * 1024                      # v7x-safe fallback
    vmem_limit = min(cap, max(16 * 1024 * 1024, int(1.5 * need) + (2 << 20)))

    out = pl.pallas_call(
        _make_kernel(N, K, tk, kt, Np, add_norm),
        out_shape=jax.ShapeDtypeStruct((M, Np), out_dtype),
        grid=(row_tiles, kt),
        in_specs=in_specs,
        out_specs=pl.BlockSpec((block_rows, Np), lambda i, k: (i, 0)),
        scratch_shapes=scratch,
        compiler_params=pltpu.CompilerParams(
            dimension_semantics=("parallel", "arbitrary"),
            vmem_limit_bytes=vmem_limit,
        ),
    )(*args)

    return out[:, :N] if Np != N else out


def _reference(x, W, b, gamma=None, beta=None):
    """Pure-JAX reference using the same bf16-matmul / f32-elementwise recipe."""
    y = jnp.dot(x.astype(jnp.bfloat16), W.astype(jnp.bfloat16),
                preferred_element_type=jnp.float32) + b
    if gamma is not None:
        mu = y.mean(-1, keepdims=True)
        var = ((y - mu) ** 2).mean(-1, keepdims=True)
        y = (y - mu) / jnp.sqrt(var + _EPS) * gamma + beta
    return y * jax.nn.sigmoid(y)


def _init_layer(key, in_dim, out_dim, add_norm=True):
    """nn.Linear default init; LayerNorm affine params (randomized for testing)."""
    k1, k2, k3, k4 = jax.random.split(key, 4)
    lim = 1.0 / float(in_dim) ** 0.5
    W = jax.random.uniform(k1, (in_dim, out_dim), jnp.float32, -lim, lim)
    b = jax.random.uniform(k2, (out_dim,), jnp.float32, -lim, lim)
    if not add_norm:
        return W, b, None, None
    gamma = 1.0 + 0.1 * jax.random.normal(k3, (out_dim,), jnp.float32)
    beta = 0.05 * jax.random.normal(k4, (out_dim,), jnp.float32)
    return W, b, gamma, beta


if __name__ == "__main__":
    key = jax.random.PRNGKey(0)

    def _check(out, ref, atol=2e-3, rtol=2e-3):
        assert out.shape == ref.shape, (out.shape, ref.shape)
        ok = jnp.allclose(out.astype(jnp.float32), ref, atol=atol, rtol=rtol)
        assert bool(ok), float(jnp.max(jnp.abs(out.astype(jnp.float32) - ref)))

    # --- Test 1: lane-dense shapes, resident K (kt = 1) -----------------------
    M, K, N = 512, 128, 256
    key, kx, kp = jax.random.split(key, 3)
    x = jax.random.normal(kx, (M, K), jnp.float32)
    W, b, g, bt = _init_layer(kp, K, N, add_norm=True)
    params = prepare_params(W, b, g, bt)
    out = linear_layer(x, params)
    jax.block_until_ready(out)
    _check(out, _reference(x, W, b, g, bt))

    # bf16-output smoke test (halved writeback stream).
    out_bf16 = linear_layer(x, params, out_dtype=jnp.bfloat16)
    jax.block_until_ready(out_bf16)
    _check(out_bf16, _reference(x, W, b, g, bt), atol=3e-2, rtol=3e-2)

    # --- Test 2: ragged dims (partial row tile, padded N lanes) ---------------
    M2, K2, N2 = 70, 48, 96
    key, kx2, kp2 = jax.random.split(key, 3)
    x2 = jax.random.normal(kx2, (M2, K2), jnp.float32)
    W2, b2, g2, bt2 = _init_layer(kp2, K2, N2, add_norm=True)
    params2 = prepare_params(W2, b2, g2, bt2)
    out2 = linear_layer(x2, params2)
    jax.block_until_ready(out2)
    _check(out2, _reference(x2, W2, b2, g2, bt2))

    # --- Test 3: K-tiled accumulator path (kt > 1, partial last K tile) -------
    M3, K3, N3 = 128, 576, 192
    key, kx3, kp3 = jax.random.split(key, 3)
    x3 = jax.random.normal(kx3, (M3, K3), jnp.float32)
    W3, b3, g3, bt3 = _init_layer(kp3, K3, N3, add_norm=True)
    params3 = prepare_params(W3, b3, g3, bt3, k_tile=256, k_resident_max=256)
    assert params3["kt"] == 3
    out3 = linear_layer(x3, params3)
    jax.block_until_ready(out3)
    _check(out3, _reference(x3, W3, b3, g3, bt3))

    # --- Test 4: add_norm=False path ------------------------------------------
    W4, b4, _, _ = _init_layer(kp2, K2, N2, add_norm=False)
    params4 = prepare_params(W4, b4)
    out4 = linear_layer(x2, params4)
    jax.block_until_ready(out4)
    _check(out4, _reference(x2, W4, b4))

    print("KERNEL_OK")
</pallas_src>

<mosaic_0001>
module attributes {stable_mosaic.version = 11 : i64} {
  func.func @kernel(%arg0: i32, %arg1: i32, %arg2: memref<256x128xf32, #tpu.memory_space<vmem>>, %arg3: memref<128x256xbf16, #tpu.memory_space<vmem>>, %arg4: memref<1x256xf32, #tpu.memory_space<vmem>>, %arg5: memref<1x256xf32, #tpu.memory_space<vmem>>, %arg6: memref<1x256xf32, #tpu.memory_space<vmem>>, %arg7: memref<256x256xf32, #tpu.memory_space<vmem>>) attributes {dimension_semantics = [#tpu.dimension_semantics<parallel>, #tpu.dimension_semantics<arbitrary>], iteration_bounds = array<i64: 2, 1>, scalar_prefetch = 0 : i64, scratch_operands = 0 : i64, tpu.core_type = #tpu.core_type<tc>, window_params = [{transform_indices = @transform_0, window_bounds = array<i64: 256, 128>}, {transform_indices = @transform_1, window_bounds = array<i64: 128, 256>}, {pipeline_mode = #tpu.pipeline_mode<synchronous>, transform_indices = @transform_2, window_bounds = array<i64: 1, 256>}, {pipeline_mode = #tpu.pipeline_mode<synchronous>, transform_indices = @transform_3, window_bounds = array<i64: 1, 256>}, {pipeline_mode = #tpu.pipeline_mode<synchronous>, transform_indices = @transform_4, window_bounds = array<i64: 1, 256>}, {transform_indices = @transform_5, window_bounds = array<i64: 256, 256>}]} {
    %c0 = arith.constant 0 : index
    %c0_0 = arith.constant 0 : index
    %0 = vector.load %arg2[%c0, %c0_0] : memref<256x128xf32, #tpu.memory_space<vmem>>, vector<256x128xf32>
    %1 = arith.truncf %0 : vector<256x128xf32> to vector<256x128xbf16>
    %c0_1 = arith.constant 0 : index
    %c0_2 = arith.constant 0 : index
    %2 = vector.load %arg3[%c0_1, %c0_2] : memref<128x256xbf16, #tpu.memory_space<vmem>>, vector<128x256xbf16>
    %cst = arith.constant dense<0.000000e+00> : vector<256x256xf32>
    %3 = tpu.matmul %1, %2, %cst {dimension_numbers = #tpu.dot_dimension_numbers<[1], [0], [0], [1], [0, 0, 1, 1], [], []>} : vector<256x128xbf16>, vector<128x256xbf16>, vector<256x256xf32> -> vector<256x256xf32>
    %c0_3 = arith.constant 0 : index
    %c0_4 = arith.constant 0 : index
    %4 = vector.load %arg4[%c0_3, %c0_4] : memref<1x256xf32, #tpu.memory_space<vmem>>, vector<1x256xf32>
    %5 = vector.broadcast %4 : vector<1x256xf32> to vector<256x256xf32>
    %6 = arith.addf %3, %5 : vector<256x256xf32>
    %cst_5 = arith.constant dense<0.000000e+00> : vector<256xf32>
    %7 = vector.multi_reduction <add>, %6, %cst_5 [1] : vector<256x256xf32> to vector<256xf32>
    %8 = vector.shape_cast %7 : vector<256xf32> to vector<256x1xf32>
    %cst_6 = arith.constant 3.906250e-03 : f32
    %9 = vector.broadcast %cst_6 : f32 to vector<256x1xf32>
    %10 = arith.mulf %8, %9 : vector<256x1xf32>
    %11 = vector.broadcast %10 : vector<256x1xf32> to vector<256x256xf32>
    %12 = arith.subf %6, %11 : vector<256x256xf32>
    %13 = arith.mulf %12, %12 : vector<256x256xf32>
    %cst_7 = arith.constant dense<0.000000e+00> : vector<256xf32>
    %14 = vector.multi_reduction <add>, %13, %cst_7 [1] : vector<256x256xf32> to vector<256xf32>
    %15 = vector.shape_cast %14 : vector<256xf32> to vector<256x1xf32>
    %cst_8 = arith.constant 3.906250e-03 : f32
    %16 = vector.broadcast %cst_8 : f32 to vector<256x1xf32>
    %17 = arith.mulf %15, %16 : vector<256x1xf32>
    %cst_9 = arith.constant 9.99999974E-6 : f32
    %18 = vector.broadcast %cst_9 : f32 to vector<256x1xf32>
    %19 = arith.addf %17, %18 : vector<256x1xf32>
    %20 = math.rsqrt %19 : vector<256x1xf32>
    %21 = vector.broadcast %20 : vector<256x1xf32> to vector<256x256xf32>
    %22 = arith.mulf %12, %21 : vector<256x256xf32>
    %c0_10 = arith.constant 0 : index
    %c0_11 = arith.constant 0 : index
    %23 = vector.load %arg5[%c0_10, %c0_11] : memref<1x256xf32, #tpu.memory_space<vmem>>, vector<1x256xf32>
    %24 = vector.broadcast %23 : vector<1x256xf32> to vector<256x256xf32>
    %25 = arith.mulf %22, %24 : vector<256x256xf32>
    %c0_12 = arith.constant 0 : index
    %c0_13 = arith.constant 0 : index
    %26 = vector.load %arg6[%c0_12, %c0_13] : memref<1x256xf32, #tpu.memory_space<vmem>>, vector<1x256xf32>
    %27 = vector.broadcast %26 : vector<1x256xf32> to vector<256x256xf32>
    %28 = arith.addf %25, %27 : vector<256x256xf32>
    %29 = arith.negf %28 : vector<256x256xf32>
    %30 = math.exp %29 : vector<256x256xf32>
    %cst_14 = arith.constant 1.000000e+00 : f32
    %31 = vector.broadcast %cst_14 : f32 to vector<256x256xf32>
    %32 = arith.addf %31, %30 : vector<256x256xf32>
    %33 = arith.divf %31, %32 : vector<256x256xf32>
    %34 = arith.mulf %28, %33 : vector<256x256xf32>
    %c0_15 = arith.constant 0 : index
    %c0_16 = arith.constant 0 : index
    %35 = vector.load %arg7[%c0_15, %c0_16] : memref<256x256xf32, #tpu.memory_space<vmem>>, vector<256x256xf32>
    tpu.vector_store %arg7[%c0_15, %c0_16], %34 {strides = array<i32>} : memref<256x256xf32, #tpu.memory_space<vmem>>, vector<256x256xf32>,
    return
  }
  func.func @transform_0(%arg0: i32, %arg1: i32) -> (i32, i32) {
    %c0_i32 = arith.constant 0 : i32
    return %arg0, %arg1 : i32, i32
  }
  func.func @transform_1(%arg0: i32, %arg1: i32) -> (i32, i32) {
    %c0_i32 = arith.constant 0 : i32
    %c0_i32_0 = arith.constant 0 : i32
    return %arg1, %c0_i32 : i32, i32
  }
  func.func @transform_2(%arg0: i32, %arg1: i32) -> (i32, i32) {
    %c0_i32 = arith.constant 0 : i32
    %c0_i32_0 = arith.constant 0 : i32
    %c0_i32_1 = arith.constant 0 : i32
    return %c0_i32, %c0_i32_0 : i32, i32
  }
  func.func @transform_3(%arg0: i32, %arg1: i32) -> (i32, i32) {
    %c0_i32 = arith.constant 0 : i32
    %c0_i32_0 = arith.constant 0 : i32
    %c0_i32_1 = arith.constant 0 : i32
    return %c0_i32, %c0_i32_0 : i32, i32
  }
  func.func @transform_4(%arg0: i32, %arg1: i32) -> (i32, i32) {
    %c0_i32 = arith.constant 0 : i32
    %c0_i32_0 = arith.constant 0 : i32
    %c0_i32_1 = arith.constant 0 : i32
    return %c0_i32, %c0_i32_0 : i32, i32
  }
  func.func @transform_5(%arg0: i32, %arg1: i32) -> (i32, i32) {
    %c0_i32 = arith.constant 0 : i32
    %c0_i32_0 = arith.constant 0 : i32
    return %arg0, %c0_i32 : i32, i32
  }
}

</mosaic_0001>

<llo_original>
// kernel: tpu_custom_call.1
$region0: #{tpu_custom_call.1}
  #allocation0 [shape = 'u32[]', space=smem, size = 0x4, offset = 0x4, fixed_abs, tag = 'smem constant byte address 0x4 - core index']
  #allocation1 [shape = 'u32[144,128]{1,0:T(1,128)}', space=vmem, size = 0x12000, scoped, tag = 'internal scratch']
  %s0 = inlined_call_operand.hbm [shape: f32[512,128], index: 0, kind: input, shape index: {}]
  %s1 = inlined_call_operand.hbm [shape: bf16[128,256], index: 1, kind: input, shape index: {}]
  %s2 = inlined_call_operand.vmem [shape: f32[1,256], index: 2, kind: input, shape index: {}]
  %s3 = inlined_call_operand.vmem [shape: f32[1,256], index: 3, kind: input, shape index: {}]
  %s4 = inlined_call_operand.vmem [shape: f32[1,256], index: 4, kind: input, shape index: {}]
  %s5 = inlined_call_operand.hbm [shape: f32[512,256], index: 5, kind: output, shape index: {}]
  %s6 = sld [smem:[#allocation0]]
  $region61: #{tpu_custom_call.1} parent=0
    _
  %s8 = ssub.s32 1, %s6
  %s9 = scalar_select 0, %s8, %s6
  $region1: #{tpu_custom_call.1} parent=0
    #allocation2 [shape = 'u8[262144]{0}', space=vmem, size = 0x40000, scoped, tag = 'input window, operand 0']
    #allocation3 [shape = 's32[2]{0}', space=sflag, size = 0x8, scoped, tag = 'scoped memory for tpu_custom_call.1']
    #allocation4 [shape = 's32[2]{0}', space=sflag, size = 0x8, scoped, tag = 'scoped memory for tpu_custom_call.1']
    #allocation5 [shape = 'u8[65536]{0}', space=vmem, size = 0x10000, scoped, tag = 'input window, operand 1, single buffered']
    #allocation6 [shape = 's32[1]{0}', space=sflag, size = 0x4, scoped, tag = 'scoped memory for tpu_custom_call.1']
    #allocation7 [shape = 'u8[524288]{0}', space=vmem, size = 0x80000, scoped, tag = 'output window, operand 0']
    %10 = vsyncpa [#allocation3], 0
    %s11 = scalar_lea.sflag [#allocation3], 1
    %12 = vsyncpa %s11, 0
    %13 = vsyncpa [#allocation6], 0
    %14 = vsyncpa [#allocation4], 0
    %s15 = scalar_lea.sflag [#allocation4], 1
    %16 = vsyncpa %s15, 0
    loop: start=0, step=1, limit=4
    $region2: #{tpu_custom_call.1} parent=1 // loop_pre_header
      _
    $region3: #{tpu_custom_call.1} parent=1 // loop_header
      %s18 = sphi 0, %s22
      %p19 = scmp.ge.s32.totalorder %s18, 4
      %s25 = sphi 0, %s37
      %s26 = sphi 0, %s33
      %s27 = sphi 0, %s25
      %s28 = sphi 0, %s26
      %s29 = sphi 0, %s27
      %s30 = sphi 0, %s28
      %s42 = sphi 0, %s44
      %s45 = sphi 0, %s42
      %s46 = sphi 0, %s45
      %s62 = sphi 0, %s46
      %s68 = sphi 0, %s70
      %s71 = sphi 0, %s68
      %s72 = sphi 0, %s71
      %s88 = sphi 0, %s72
      %s92 = sphi 0, %s92
      %s94 = sphi 0, %s92
      %s95 = sphi 0, %s94
      %s109 = sphi 0, %s95
      %s113 = sphi 0, %s113
      %s115 = sphi 0, %s113
      %s116 = sphi 0, %s115
      %s130 = sphi 0, %s116
      %s134 = sphi 0, %s134
      %s136 = sphi 0, %s134
      %s137 = sphi 0, %s136
      %s151 = sphi 0, %s137
      %s157 = sphi 0, %s159
      %s160 = sphi 0, %s157
      %s161 = sphi 0, %s160
      %s177 = sphi 0, %s161
    $region4: #{tpu_custom_call.1} parent=1 // loop_header_branch
      %21 = sbr.rel (%p19) target = $region8
    $region5: #{tpu_custom_call.1} parent=1 // loop_body
      %s23 = ssub.s32 %s18, 1
      %s24 = ssub.s32 %s18, 2
      %s31 = sadd.s32 1, %s26
      %p32 = scmp.ge.s32.totalorder %s31, 1
      %s33 = scalar_select %p32, 0, %s31
      %s34 = sadd.s32 1, %s25
      %s35 = scalar_select %p32, %s34, %s25
      %p36 = scmp.ge.s32.totalorder %s35, 2
      %s37 = scalar_select %p36, 0, %s35
      %s38 = ssub.s32 %s25, %s37
      %s39 = ssub.s32 %s26, %s33
      %s40 = sor.u32 %s38, %s39
      %p41 = scmp.eq.s32.totalorder %s40, 0
      %s43 = sadd.s32 %s42, 1
      %s44 = scalar_select %p41, %s42, %s43
      %p47 = pneg %p41
      %p48 = scmp.eq.s32.totalorder %s18, 1
      %p49 = por %p47, %p48
      %p50 = scmp.ne.s32.totalorder %s42, %s45
      %p51 = scmp.eq.s32.totalorder %s18, 0
      %p52 = por %p50, %p51
      %p53 = scmp.ne.s32.totalorder %s42, %s45
      %p54 = scmp.eq.s32.totalorder %s23, 1
      %p55 = por %p53, %p54
      %p56 = scmp.ne.s32.totalorder %s45, %s46
      %p57 = scmp.eq.s32.totalorder %s23, 0
      %p58 = por %p56, %p57
      %p59 = scmp.ne.s32.totalorder %s45, %s46
      %p60 = scmp.eq.s32.totalorder %s24, 1
      %p61 = por %p59, %p60
      %p63 = scmp.ne.s32.totalorder %s46, %s62
      %p64 = scmp.eq.s32.totalorder %s24, 0
      %p65 = por %p63, %p64
      %s66 = ssub.s32 %s26, %s33
      %p67 = scmp.eq.s32.totalorder %s66, 0
      %s69 = sadd.s32 %s68, 1
      %s70 = scalar_select %p67, %s68, %s69
      %p73 = pneg %p67
      %p74 = scmp.eq.s32.totalorder %s18, 1
      %p75 = por %p73, %p74
      %p76 = scmp.ne.s32.totalorder %s68, %s71
      %p77 = scmp.eq.s32.totalorder %s18, 0
      %p78 = por %p76, %p77
      %p79 = scmp.ne.s32.totalorder %s68, %s71
      %p80 = scmp.eq.s32.totalorder %s23, 1
      %p81 = por %p79, %p80
      %p82 = scmp.ne.s32.totalorder %s71, %s72
      %p83 = scmp.eq.s32.totalorder %s23, 0
      %p84 = por %p82, %p83
      %p85 = scmp.ne.s32.totalorder %s71, %s72
      %p86 = scmp.eq.s32.totalorder %s24, 1
      %p87 = por %p85, %p86
      %p89 = scmp.ne.s32.totalorder %s72, %s88
      %p90 = scmp.eq.s32.totalorder %s24, 0
      %p91 = por %p89, %p90
      %s93 = sadd.s32 %s92, 1
      %p96 = scmp.eq.s32.totalorder %s18, 1
      %p97 = scmp.ne.s32.totalorder %s92, %s94
      %p98 = scmp.eq.s32.totalorder %s18, 0
      %p99 = por %p97, %p98
      %p100 = scmp.ne.s32.totalorder %s92, %s94
      %p101 = scmp.eq.s32.totalorder %s23, 1
      %p102 = por %p100, %p101
      %p103 = scmp.ne.s32.totalorder %s94, %s95
      %p104 = scmp.eq.s32.totalorder %s23, 0
      %p105 = por %p103, %p104
      %p106 = scmp.ne.s32.totalorder %s94, %s95
      %p107 = scmp.eq.s32.totalorder %s24, 1
      %p108 = por %p106, %p107
      %p110 = scmp.ne.s32.totalorder %s95, %s109
      %p111 = scmp.eq.s32.totalorder %s24, 0
      %p112 = por %p110, %p111
      %s114 = sadd.s32 %s113, 1
      %p117 = scmp.eq.s32.totalorder %s18, 1
      %p118 = scmp.ne.s32.totalorder %s113, %s115
      %p119 = scmp.eq.s32.totalorder %s18, 0
      %p120 = por %p118, %p119
      %p121 = scmp.ne.s32.totalorder %s113, %s115
      %p122 = scmp.eq.s32.totalorder %s23, 1
      %p123 = por %p121, %p122
      %p124 = scmp.ne.s32.totalorder %s115, %s116
      %p125 = scmp.eq.s32.totalorder %s23, 0
      %p126 = por %p124, %p125
      %p127 = scmp.ne.s32.totalorder %s115, %s116
      %p128 = scmp.eq.s32.totalorder %s24, 1
      %p129 = por %p127, %p128
      %p131 = scmp.ne.s32.totalorder %s116, %s130
      %p132 = scmp.eq.s32.totalorder %s24, 0
      %p133 = por %p131, %p132
      %s135 = sadd.s32 %s134, 1
      %p138 = scmp.eq.s32.totalorder %s18, 1
      %p139 = scmp.ne.s32.totalorder %s134, %s136
      %p140 = scmp.eq.s32.totalorder %s18, 0
      %p141 = por %p139, %p140
      %p142 = scmp.ne.s32.totalorder %s134, %s136
      %p143 = scmp.eq.s32.totalorder %s23, 1
      %p144 = por %p142, %p143
      %p145 = scmp.ne.s32.totalorder %s136, %s137
      %p146 = scmp.eq.s32.totalorder %s23, 0
      %p147 = por %p145, %p146
      %p148 = scmp.ne.s32.totalorder %s136, %s137
      %p149 = scmp.eq.s32.totalorder %s24, 1
      %p150 = por %p148, %p149
      %p152 = scmp.ne.s32.totalorder %s137, %s151
      %p153 = scmp.eq.s32.totalorder %s24, 0
      %p154 = por %p152, %p153
      %s155 = ssub.s32 %s25, %s37
      %p156 = scmp.eq.s32.totalorder %s155, 0
      %s158 = sadd.s32 %s157, 1
      %s159 = scalar_select %p156, %s157, %s158
      %p162 = pneg %p156
      %p163 = scmp.eq.s32.totalorder %s18, 1
      %p164 = por %p162, %p163
      %p165 = scmp.ne.s32.totalorder %s157, %s160
      %p166 = scmp.eq.s32.totalorder %s18, 0
      %p167 = por %p165, %p166
      %p168 = scmp.ne.s32.totalorder %s157, %s160
      %p169 = scmp.eq.s32.totalorder %s23, 1
      %p170 = por %p168, %p169
      %p171 = scmp.ne.s32.totalorder %s160, %s161
      %p172 = scmp.eq.s32.totalorder %s23, 0
      %p173 = por %p171, %p172
      %p174 = scmp.ne.s32.totalorder %s160, %s161
      %p175 = scmp.eq.s32.totalorder %s24, 1
      %p176 = por %p174, %p175
      %p178 = scmp.ne.s32.totalorder %s161, %s177
      %p179 = scmp.eq.s32.totalorder %s24, 0
      %p180 = por %p178, %p179
      %p181 = scmp.le.s32.totalorder 1, %s18
      %p182 = scmp.lt.s32.totalorder %s18, 3
      %p183 = pnand %p181, %p182
      %p184 = pneg %p183
      // Predicated region
      $region9: #{tpu_custom_call.1} parent=5 // pred_check
        _
      $region10: #{tpu_custom_call.1} parent=5 // pred_check_branch
        %186 = sbr.rel (%p183) target = $region12
      $region11: #{tpu_custom_call.1} parent=5 // pred_region
        %s187 = ssub.s32 %s18, 1
        // Predicated region
        $region13: #{tpu_custom_call.1} parent=11 // pred_check
          %p188 = pneg %p84
        $region14: #{tpu_custom_call.1} parent=11 // pred_check_branch
          %190 = sbr.rel (%p188) target = $region16
        $region15: #{tpu_custom_call.1} parent=11 // pred_region
          %s191 = smul.u32 16, %s28
          %s193 = ssub.s32 2048, 2048
          %194 = vsyncadd [#allocation6], %s193
          %s195 = smul.addr %s191, 2
          %s196 = smul.addr %s195, 64
          %s197 = scalar_lea.hbm %s1, %s196
          %s198 = sshll.u32 [#allocation5], 4
          %s199 = int_to_ptr.vmem [resolvable:$true] %s198
          %204 = dma.hbm_to_vmem [thread:$0]  %s197, 2048, %s199, [#allocation6], 128, 128, 8
        $region16: #{tpu_custom_call.1} parent=11 // pred_fallthru
          _
        // Predicated region
        $region17: #{tpu_custom_call.1} parent=11 // pred_check
          %p205 = pneg %p105
        $region18: #{tpu_custom_call.1} parent=11 // pred_check_branch
          %207 = sbr.rel (%p205) target = $region20
        $region19: #{tpu_custom_call.1} parent=11 // pred_region
          _
        $region20: #{tpu_custom_call.1} parent=11 // pred_fallthru
          _
        // Predicated region
        $region21: #{tpu_custom_call.1} parent=11 // pred_check
          %p208 = pneg %p126
        $region22: #{tpu_custom_call.1} parent=11 // pred_check_branch
          %210 = sbr.rel (%p208) target = $region24
        $region23: #{tpu_custom_call.1} parent=11 // pred_region
          _
        $region24: #{tpu_custom_call.1} parent=11 // pred_fallthru
          _
        // Predicated region
        $region25: #{tpu_custom_call.1} parent=11 // pred_check
          %p211 = pneg %p147
        $region26: #{tpu_custom_call.1} parent=11 // pred_check_branch
          %213 = sbr.rel (%p211) target = $region28
        $region27: #{tpu_custom_call.1} parent=11 // pred_region
          _
        $region28: #{tpu_custom_call.1} parent=11 // pred_fallthru
          _
      $region12: #{tpu_custom_call.1} parent=5 // pred_fallthru
        _
      %p214 = scmp.lt.s32.totalorder %s18, 2
      // Predicated region
      $region29: #{tpu_custom_call.1} parent=5 // pred_check
        %p215 = pneg %p214
      $region30: #{tpu_custom_call.1} parent=5 // pred_check_branch
        %217 = sbr.rel (%p215) target = $region32
      $region31: #{tpu_custom_call.1} parent=5 // pred_region
        // Predicated region
        $region33: #{tpu_custom_call.1} parent=31 // pred_check
          %p218 = pneg %p52
        $region34: #{tpu_custom_call.1} parent=31 // pred_check_branch
          %220 = sbr.rel (%p218) target = $region36
        $region35: #{tpu_custom_call.1} parent=31 // pred_region
          %s221 = sand.u32 %s42, 1
          %s222 = scalar_lea.sflag [#allocation3], %s221
          %s223 = sand.u32 %s42, 1
          %s224 = smul.addr %s223, 256
          %s225 = scalar_lea.vmem [#allocation2], %s224
          %s226 = smul.u32 32, %s25
          %s228 = ssub.s32 4096, 4096
          %229 = vsyncadd %s222, %s228
          %s230 = sadd.s32 %s26, %s226
          %s231 = smul.addr %s230, 128
          %s232 = scalar_lea.hbm %s0, %s231
          %s233 = sshll.u32 %s225, 4
          %s234 = int_to_ptr.vmem [resolvable:$true] %s233
          %239 = dma.hbm_to_vmem [thread:$0]  %s232, 4096, %s234, %s222, 128, 128, 8
        $region36: #{tpu_custom_call.1} parent=31 // pred_fallthru
          _
      $region32: #{tpu_custom_call.1} parent=5 // pred_fallthru
        _
      %p240 = scmp.le.s32.totalorder 1, %s18
      %p241 = scmp.lt.s32.totalorder %s18, 3
      %p242 = pnand %p240, %p241
      %p243 = pneg %p242
      // Predicated region
      $region37: #{tpu_custom_call.1} parent=5 // pred_check
        _
      $region38: #{tpu_custom_call.1} parent=5 // pred_check_branch
        %245 = sbr.rel (%p242) target = $region40
      $region39: #{tpu_custom_call.1} parent=5 // pred_region
        %s246 = ssub.s32 %s18, 1
        %s247 = sand.u32 %s45, 1
        %s248 = scalar_lea.sflag [#allocation3], %s247
        %s249 = sand.u32 %s45, 1
        %s250 = smul.addr %s249, 256
        %s251 = scalar_lea.vmem [#allocation2], %s250
        // Predicated region
        $region41: #{tpu_custom_call.1} parent=39 // pred_check
          %p252 = pneg %p58
        $region42: #{tpu_custom_call.1} parent=39 // pred_check_branch
          %254 = sbr.rel (%p252) target = $region44
        $region43: #{tpu_custom_call.1} parent=39 // pred_region
          %255 = dma.done %s248, 4096
        $region44: #{tpu_custom_call.1} parent=39 // pred_fallthru
          _
        // Predicated region
        $region45: #{tpu_custom_call.1} parent=39 // pred_check
          %p256 = pneg %p84
        $region46: #{tpu_custom_call.1} parent=39 // pred_check_branch
          %258 = sbr.rel (%p256) target = $region48
        $region47: #{tpu_custom_call.1} parent=39 // pred_region
          %259 = dma.done [#allocation6], 2048
        $region48: #{tpu_custom_call.1} parent=39 // pred_fallthru
          _
        %s260 = sand.u32 %s45, 1
        %s261 = scalar_lea.sflag [#allocation3], %s260
        %s262 = sand.u32 %s45, 1
        %s263 = smul.addr %s262, 256
        %s264 = scalar_lea.vmem [#allocation2], %s263
        %p265 = pneg %p58
        %p266 = pneg %p55
        %p267 = pneg %p84
        %p268 = pneg %p81
        %p269 = pneg %p105
        %p270 = pneg %p102
        %p271 = pneg %p126
        %p272 = pneg %p123
        %p273 = pneg %p147
        %p274 = pneg %p144
        %p275 = pneg %p173
        %p276 = pneg %p170
        %s277 = sand.u32 %s160, 1
        %s278 = scalar_lea.sflag [#allocation4], %s277
        %s279 = sand.u32 %s160, 1
        %s280 = smul.addr %s279, 512
        %s281 = scalar_lea.vmem [#allocation7], %s280
        %s282 = smul.u32 32, %s27
        %s283 = smul.u32 16, %s28
        %s284 = smul.u32 32, %s27
        %v286 = vld [vmem:[%s251] sm:$0xff]
        %v287 = vld [vmem:[%s251 + $0x8] sm:$0xff]
        %v288 = vld [vmem:[%s251 + $0x10] sm:$0xff]
        %v289 = vld [vmem:[%s251 + $0x18] sm:$0xff]
        %v290 = vld [vmem:[%s251 + $0x20] sm:$0xff]
        %v291 = vld [vmem:[%s251 + $0x28] sm:$0xff]
        %v292 = vld [vmem:[%s251 + $0x30] sm:$0xff]
        %v293 = vld [vmem:[%s251 + $0x38] sm:$0xff]
        %v294 = vld [vmem:[%s251 + $0x40] sm:$0xff]
        %v295 = vld [vmem:[%s251 + $0x48] sm:$0xff]
        %v296 = vld [vmem:[%s251 + $0x50] sm:$0xff]
        %v297 = vld [vmem:[%s251 + $0x58] sm:$0xff]
        %v298 = vld [vmem:[%s251 + $0x60] sm:$0xff]
        %v299 = vld [vmem:[%s251 + $0x68] sm:$0xff]
        %v300 = vld [vmem:[%s251 + $0x70] sm:$0xff]
        %v301 = vld [vmem:[%s251 + $0x78] sm:$0xff]
        %v302 = vld [vmem:[%s251 + $0x80] sm:$0xff]
        %v303 = vld [vmem:[%s251 + $0x88] sm:$0xff]
        %v304 = vld [vmem:[%s251 + $0x90] sm:$0xff]
        %v305 = vld [vmem:[%s251 + $0x98] sm:$0xff]
        %v306 = vld [vmem:[%s251 + $0xa0] sm:$0xff]
        %v307 = vld [vmem:[%s251 + $0xa8] sm:$0xff]
        %v308 = vld [vmem:[%s251 + $0xb0] sm:$0xff]
        %v309 = vld [vmem:[%s251 + $0xb8] sm:$0xff]
        %v310 = vld [vmem:[%s251 + $0xc0] sm:$0xff]
        %v311 = vld [vmem:[%s251 + $0xc8] sm:$0xff]
        %v312 = vld [vmem:[%s251 + $0xd0] sm:$0xff]
        %v313 = vld [vmem:[%s251 + $0xd8] sm:$0xff]
        %v314 = vld [vmem:[%s251 + $0xe0] sm:$0xff]
        %v315 = vld [vmem:[%s251 + $0xe8] sm:$0xff]
        %v316 = vld [vmem:[%s251 + $0xf0] sm:$0xff]
        %v317 = vld [vmem:[%s251 + $0xf8] sm:$0xff]
        %v318 = vpack.c.bf16 %v287, %v286
        %v319 = vpack.c.bf16 %v289, %v288
        %v320 = vpack.c.bf16 %v291, %v290
        %v321 = vpack.c.bf16 %v293, %v292
        %v322 = vpack.c.bf16 %v295, %v294
        %v323 = vpack.c.bf16 %v297, %v296
        %v324 = vpack.c.bf16 %v299, %v298
        %v325 = vpack.c.bf16 %v301, %v300
        %v326 = vpack.c.bf16 %v303, %v302
        %v327 = vpack.c.bf16 %v305, %v304
        %v328 = vpack.c.bf16 %v307, %v306
        %v329 = vpack.c.bf16 %v309, %v308
        %v330 = vpack.c.bf16 %v311, %v310
        %v331 = vpack.c.bf16 %v313, %v312
        %v332 = vpack.c.bf16 %v315, %v314
        %v333 = vpack.c.bf16 %v317, %v316
        %v334 = vld [vmem:[#allocation5] sm:$0xff]
        %v335 = vld [vmem:[#allocation5 + $0x8] sm:$0xff]
        %v336 = vld [vmem:[#allocation5 + $0x10] sm:$0xff]
        %v337 = vld [vmem:[#allocation5 + $0x18] sm:$0xff]
        %v338 = vld [vmem:[#allocation5 + $0x20] sm:$0xff]
        %v339 = vld [vmem:[#allocation5 + $0x28] sm:$0xff]
        %v340 = vld [vmem:[#allocation5 + $0x30] sm:$0xff]
        %v341 = vld [vmem:[#allocation5 + $0x38] sm:$0xff]
        %v342 = vld [vmem:[#allocation5 + $0x40] sm:$0xff]
        %v343 = vld [vmem:[#allocation5 + $0x48] sm:$0xff]
        %v344 = vld [vmem:[#allocation5 + $0x50] sm:$0xff]
        %v345 = vld [vmem:[#allocation5 + $0x58] sm:$0xff]
        %v346 = vld [vmem:[#allocation5 + $0x60] sm:$0xff]
        %v347 = vld [vmem:[#allocation5 + $0x68] sm:$0xff]
        %v348 = vld [vmem:[#allocation5 + $0x70] sm:$0xff]
        %v349 = vld [vmem:[#allocation5 + $0x78] sm:$0xff]
        %v350 = vld [vmem:[%s2] sm:$0x3]
        %v352 = vlaneseq
        %v353 = vshrl.u32 %v352, 7
        %v354 = vsub.s32 0, %v353
        %v355 = vrot.slane %v350, %v354
        %v356 = vlaneseq
        %v357 = vshrl.u32 %v356, 7
        %v358 = vsub.s32 1, %v357
        %v359 = vrot.slane %v350, %v358
        %v378 = vunpack.c.l.b16 %v334
        %v379 = vunpack.c.h.b16 %v334
        %v380 = vunpack.c.l.b16 %v335
        %v381 = vunpack.c.h.b16 %v335
        %v382 = vunpack.c.l.b16 %v336
        %v383 = vunpack.c.h.b16 %v336
        %v384 = vunpack.c.l.b16 %v337
        %v385 = vunpack.c.h.b16 %v337
        %v386 = vunpack.c.l.b16 %v338
        %v387 = vunpack.c.h.b16 %v338
        %v388 = vunpack.c.l.b16 %v339
        %v389 = vunpack.c.h.b16 %v339
        %v390 = vunpack.c.l.b16 %v340
        %v391 = vunpack.c.h.b16 %v340
        %v392 = vunpack.c.l.b16 %v341
        %v393 = vunpack.c.h.b16 %v341
        %v394 = vunpack.c.l.b16 %v342
        %v395 = vunpack.c.h.b16 %v342
        %v396 = vunpack.c.l.b16 %v343
        %v397 = vunpack.c.h.b16 %v343
        %v398 = vunpack.c.l.b16 %v344
        %v399 = vunpack.c.h.b16 %v344
        %v400 = vunpack.c.l.b16 %v345
        %v401 = vunpack.c.h.b16 %v345
        %v402 = vunpack.c.l.b16 %v346
        %v403 = vunpack.c.h.b16 %v346
        %v404 = vunpack.c.l.b16 %v347
        %v405 = vunpack.c.h.b16 %v347
        %v406 = vunpack.c.l.b16 %v348
        %v407 = vunpack.c.h.b16 %v348
        %v408 = vunpack.c.l.b16 %v349
        %v409 = vunpack.c.h.b16 %v349
        %v410 = vpack.c.b16 %v380, %v378
        %v411 = vpack.c.b16 %v381, %v379
        %v412 = vpack.c.b16 %v384, %v382
        %v413 = vpack.c.b16 %v385, %v383
        %v414 = vpack.c.b16 %v388, %v386
        %v415 = vpack.c.b16 %v389, %v387
        %v416 = vpack.c.b16 %v392, %v390
        %v417 = vpack.c.b16 %v393, %v391
        %v418 = vpack.c.b16 %v396, %v394
        %v419 = vpack.c.b16 %v397, %v395
        %v420 = vpack.c.b16 %v400, %v398
        %v421 = vpack.c.b16 %v401, %v399
        %v422 = vpack.c.b16 %v404, %v402
        %v423 = vpack.c.b16 %v405, %v403
        %v424 = vpack.c.b16 %v408, %v406
        %v425 = vpack.c.b16 %v409, %v407
        %442 = vmatprep.subr.bf16.mxu0 %v425
        %443 = vmatpush1.bf16.msra.mxu0 %v424
        %444 = vmatprep.subr.bf16.mxu0 %v423
        %445 = vmatpush1.bf16.msra.mxu0 %v422
        %446 = vmatprep.subr.bf16.mxu0 %v421
        %447 = vmatpush1.bf16.msra.mxu0 %v420
        %448 = vmatprep.subr.bf16.mxu0 %v419
        %449 = vmatpush1.bf16.msra.mxu0 %v418
        %450 = vmatprep.subr.bf16.mxu0 %v417
        %451 = vmatpush1.bf16.msra.mxu0 %v416
        %452 = vmatprep.subr.bf16.mxu0 %v415
        %453 = vmatpush1.bf16.msra.mxu0 %v414
        %454 = vmatprep.subr.bf16.mxu0 %v413
        %455 = vmatpush1.bf16.msra.mxu0 %v412
        %456 = vmatprep.subr.bf16.mxu0 %v411
        %457 = vmatpush1.bf16.msra.mxu0 %v410
        %458 = vmatprep.subr.bf16.mxu0 0
        %459 = vmatpush2.bf16.msra.mxu0 0
        %460 = vmatprep.subr.bf16.mxu0 0
        %461 = vmatpush2.bf16.msra.mxu0 0
        %462 = vmatprep.subr.bf16.mxu0 0
        %463 = vmatpush2.bf16.msra.mxu0 0
        %464 = vmatprep.subr.bf16.mxu0 0
        %465 = vmatpush2.bf16.msra.mxu0 0
        %466 = vmatprep.subr.bf16.mxu0 0
        %467 = vmatpush2.bf16.msra.mxu0 0
        %468 = vmatprep.subr.bf16.mxu0 0
        %469 = vmatpush2.bf16.msra.mxu0 0
        %470 = vmatprep.subr.bf16.mxu0 0
        %471 = vmatpush2.bf16.msra.mxu0 0
        %472 = vmatprep.subr.bf16.mxu0 0
        %473 = vmatpush2.bf16.msra.mxu0 0
        %474 = vmatprep.mubr.bf16.mxu0 0
        %475 = vmatmul.mubr.bf16.gmra.mxu0 %v318
        %v476 = vpop.f32.mrf.mxu0
        %v477 = vadd.f32 %v355, %v476
        %v478 = vpop.f32.mrf.mxu0
        %v479 = vadd.f32 %v359, %v478
        %v480 = vpop.f32.mrf.mxu0
        %v481 = vadd.f32 %v355, %v480
        %v482 = vpop.f32.mrf.mxu0
        %v483 = vadd.f32 %v359, %v482
        %484 = vmatprep.mubr.bf16.mxu0 0
        %485 = vmatmul.mubr.bf16.gmra.mxu0 %v319
        %v486 = vpop.f32.mrf.mxu0
        %v487 = vadd.f32 %v355, %v486
        %v488 = vpop.f32.mrf.mxu0
        %v489 = vadd.f32 %v359, %v488
        %v490 = vpop.f32.mrf.mxu0
        %v491 = vadd.f32 %v355, %v490
        %v492 = vpop.f32.mrf.mxu0
        %v493 = vadd.f32 %v359, %v492
        %494 = vmatprep.mubr.bf16.mxu0 0
        %495 = vmatmul.mubr.bf16.gmra.mxu0 %v320
        %v496 = vpop.f32.mrf.mxu0
        %v497 = vadd.f32 %v355, %v496
        %v498 = vpop.f32.mrf.mxu0
        %v499 = vadd.f32 %v359, %v498
        %v500 = vpop.f32.mrf.mxu0
        %v501 = vadd.f32 %v355, %v500
        %v502 = vpop.f32.mrf.mxu0
        %v503 = vadd.f32 %v359, %v502
        %504 = vmatprep.mubr.bf16.mxu0 0
        %505 = vmatmul.mubr.bf16.gmra.mxu0 %v321
        %v506 = vpop.f32.mrf.mxu0
        %v507 = vadd.f32 %v355, %v506
        %v508 = vpop.f32.mrf.mxu0
        %v509 = vadd.f32 %v359, %v508
        %v510 = vpop.f32.mrf.mxu0
        %v511 = vadd.f32 %v355, %v510
        %v512 = vpop.f32.mrf.mxu0
        %v513 = vadd.f32 %v359, %v512
        %514 = vmatprep.mubr.bf16.mxu0 0
        %515 = vmatmul.mubr.bf16.gmra.mxu0 %v322
        %v516 = vpop.f32.mrf.mxu0
        %v517 = vadd.f32 %v355, %v516
        %v518 = vpop.f32.mrf.mxu0
        %v519 = vadd.f32 %v359, %v518
        %v520 = vpop.f32.mrf.mxu0
        %v521 = vadd.f32 %v355, %v520
        %v522 = vpop.f32.mrf.mxu0
        %v523 = vadd.f32 %v359, %v522
        %524 = vmatprep.mubr.bf16.mxu0 0
        %525 = vmatmul.mubr.bf16.gmra.mxu0 %v323
        %v526 = vpop.f32.mrf.mxu0
        %v527 = vadd.f32 %v355, %v526
        %v528 = vpop.f32.mrf.mxu0
        %v529 = vadd.f32 %v359, %v528
        %v530 = vpop.f32.mrf.mxu0
        %v531 = vadd.f32 %v355, %v530
        %v532 = vpop.f32.mrf.mxu0
        %v533 = vadd.f32 %v359, %v532
        %534 = vmatprep.mubr.bf16.mxu0 0
        %535 = vmatmul.mubr.bf16.gmra.mxu0 %v324
        %v536 = vpop.f32.mrf.mxu0
        %v537 = vadd.f32 %v355, %v536
        %v538 = vpop.f32.mrf.mxu0
        %v539 = vadd.f32 %v359, %v538
        %v540 = vpop.f32.mrf.mxu0
        %v541 = vadd.f32 %v355, %v540
        %v542 = vpop.f32.mrf.mxu0
        %v543 = vadd.f32 %v359, %v542
        %544 = vmatprep.mubr.bf16.mxu0 0
        %545 = vmatmul.mubr.bf16.gmra.mxu0 %v325
        %v546 = vpop.f32.mrf.mxu0
        %v547 = vadd.f32 %v355, %v546
        %v548 = vpop.f32.mrf.mxu0
        %v549 = vadd.f32 %v359, %v548
        %v550 = vpop.f32.mrf.mxu0
        %v551 = vadd.f32 %v355, %v550
        %v552 = vpop.f32.mrf.mxu0
        %v553 = vadd.f32 %v359, %v552
        %554 = vmatprep.mubr.bf16.mxu0 0
        %555 = vmatmul.mubr.bf16.gmra.mxu0 %v326
        %v556 = vpop.f32.mrf.mxu0
        %v557 = vadd.f32 %v355, %v556
        %v558 = vpop.f32.mrf.mxu0
        %v559 = vadd.f32 %v359, %v558
        %v560 = vpop.f32.mrf.mxu0
        %v561 = vadd.f32 %v355, %v560
        %v562 = vpop.f32.mrf.mxu0
        %v563 = vadd.f32 %v359, %v562
        %564 = vmatprep.mubr.bf16.mxu0 0
        %565 = vmatmul.mubr.bf16.gmra.mxu0 %v327
        %v566 = vpop.f32.mrf.mxu0
        %v567 = vadd.f32 %v355, %v566
        %v568 = vpop.f32.mrf.mxu0
        %v569 = vadd.f32 %v359, %v568
        %v570 = vpop.f32.mrf.mxu0
        %v571 = vadd.f32 %v355, %v570
        %v572 = vpop.f32.mrf.mxu0
        %v573 = vadd.f32 %v359, %v572
        %574 = vmatprep.mubr.bf16.mxu0 0
        %575 = vmatmul.mubr.bf16.gmra.mxu0 %v328
        %v576 = vpop.f32.mrf.mxu0
        %v577 = vadd.f32 %v355, %v576
        %v578 = vpop.f32.mrf.mxu0
        %v579 = vadd.f32 %v359, %v578
        %v580 = vpop.f32.mrf.mxu0
        %v581 = vadd.f32 %v355, %v580
        %v582 = vpop.f32.mrf.mxu0
        %v583 = vadd.f32 %v359, %v582
        %584 = vmatprep.mubr.bf16.mxu0 0
        %585 = vmatmul.mubr.bf16.gmra.mxu0 %v329
        %v586 = vpop.f32.mrf.mxu0
        %v587 = vadd.f32 %v355, %v586
        %v588 = vpop.f32.mrf.mxu0
        %v589 = vadd.f32 %v359, %v588
        %v590 = vpop.f32.mrf.mxu0
        %v591 = vadd.f32 %v355, %v590
        %v592 = vpop.f32.mrf.mxu0
        %v593 = vadd.f32 %v359, %v592
        %594 = vmatprep.mubr.bf16.mxu0 0
        %595 = vmatmul.mubr.bf16.gmra.mxu0 %v330
        %v596 = vpop.f32.mrf.mxu0
        %v597 = vadd.f32 %v355, %v596
        %v598 = vpop.f32.mrf.mxu0
        %v599 = vadd.f32 %v359, %v598
        %v600 = vpop.f32.mrf.mxu0
        %v601 = vadd.f32 %v355, %v600
        %v602 = vpop.f32.mrf.mxu0
        %v603 = vadd.f32 %v359, %v602
        %604 = vmatprep.mubr.bf16.mxu0 0
        %605 = vmatmul.mubr.bf16.gmra.mxu0 %v331
        %v606 = vpop.f32.mrf.mxu0
        %v607 = vadd.f32 %v355, %v606
        %v608 = vpop.f32.mrf.mxu0
        %v609 = vadd.f32 %v359, %v608
        %v610 = vpop.f32.mrf.mxu0
        %v611 = vadd.f32 %v355, %v610
        %v612 = vpop.f32.mrf.mxu0
        %v613 = vadd.f32 %v359, %v612
        %614 = vmatprep.mubr.bf16.mxu0 0
        %615 = vmatmul.mubr.bf16.gmra.mxu0 %v332
        %v616 = vpop.f32.mrf.mxu0
        %v617 = vadd.f32 %v355, %v616
        %v618 = vpop.f32.mrf.mxu0
        %v619 = vadd.f32 %v359, %v618
        %v620 = vpop.f32.mrf.mxu0
        %v621 = vadd.f32 %v355, %v620
        %v622 = vpop.f32.mrf.mxu0
        %v623 = vadd.f32 %v359, %v622
        %624 = vmatprep.mubr.bf16.mxu0 0
        %625 = vmatmul.mubr.bf16.gmra.mxu0 %v333
        %v626 = vpop.f32.mrf.mxu0
        %v627 = vadd.f32 %v355, %v626
        %v628 = vpop.f32.mrf.mxu0
        %v629 = vadd.f32 %v359, %v628
        %v630 = vpop.f32.mrf.mxu0
        %v631 = vadd.f32 %v355, %v630
        %v632 = vpop.f32.mrf.mxu0
        %v633 = vadd.f32 %v359, %v632
        %634 = vdwg.mxu0
        %v635 = vadd.f32 %v477, %v479
        %636 = vadd.xlane.f32.xlu0 %v635
        %v637 = vpop.xlane.xlu0 %636
        %v638 = vadd.f32 %v481, %v483
        %639 = vadd.xlane.f32.xlu0 %v638
        %v640 = vpop.xlane.xlu0 %639
        %v641 = vadd.f32 %v487, %v489
        %642 = vadd.xlane.f32.xlu0 %v641
        %v643 = vpop.xlane.xlu0 %642
        %v644 = vadd.f32 %v491, %v493
        %645 = vadd.xlane.f32.xlu0 %v644
        %v646 = vpop.xlane.xlu0 %645
        %v647 = vadd.f32 %v497, %v499
        %648 = vadd.xlane.f32.xlu0 %v647
        %v649 = vpop.xlane.xlu0 %648
        %v650 = vadd.f32 %v501, %v503
        %651 = vadd.xlane.f32.xlu0 %v650
        %v652 = vpop.xlane.xlu0 %651
        %v653 = vadd.f32 %v507, %v509
        %654 = vadd.xlane.f32.xlu0 %v653
        %v655 = vpop.xlane.xlu0 %654
        %v656 = vadd.f32 %v511, %v513
        %657 = vadd.xlane.f32.xlu0 %v656
        %v658 = vpop.xlane.xlu0 %657
        %v659 = vadd.f32 %v517, %v519
        %660 = vadd.xlane.f32.xlu0 %v659
        %v661 = vpop.xlane.xlu0 %660
        %v662 = vadd.f32 %v521, %v523
        %663 = vadd.xlane.f32.xlu0 %v662
        %v664 = vpop.xlane.xlu0 %663
        %v665 = vadd.f32 %v527, %v529
        %666 = vadd.xlane.f32.xlu0 %v665
        %v667 = vpop.xlane.xlu0 %666
        %v668 = vadd.f32 %v531, %v533
        %669 = vadd.xlane.f32.xlu0 %v668
        %v670 = vpop.xlane.xlu0 %669
        %v671 = vadd.f32 %v537, %v539
        %672 = vadd.xlane.f32.xlu0 %v671
        %v673 = vpop.xlane.xlu0 %672
        %v674 = vadd.f32 %v541, %v543
        %675 = vadd.xlane.f32.xlu0 %v674
        %v676 = vpop.xlane.xlu0 %675
        %v677 = vadd.f32 %v547, %v549
        %678 = vadd.xlane.f32.xlu0 %v677
        %v679 = vpop.xlane.xlu0 %678
        %v680 = vadd.f32 %v551, %v553
        %681 = vadd.xlane.f32.xlu0 %v680
        %v682 = vpop.xlane.xlu0 %681
        %v683 = vadd.f32 %v557, %v559
        %684 = vadd.xlane.f32.xlu0 %v683
        %v685 = vpop.xlane.xlu0 %684
        %v686 = vadd.f32 %v561, %v563
        %687 = vadd.xlane.f32.xlu0 %v686
        %v688 = vpop.xlane.xlu0 %687
        %v689 = vadd.f32 %v567, %v569
        %690 = vadd.xlane.f32.xlu0 %v689
        %v691 = vpop.xlane.xlu0 %690
        %v692 = vadd.f32 %v571, %v573
        %693 = vadd.xlane.f32.xlu0 %v692
        %v694 = vpop.xlane.xlu0 %693
        %v695 = vadd.f32 %v577, %v579
        %696 = vadd.xlane.f32.xlu0 %v695
        %v697 = vpop.xlane.xlu0 %696
        %v698 = vadd.f32 %v581, %v583
        %699 = vadd.xlane.f32.xlu0 %v698
        %v700 = vpop.xlane.xlu0 %699
        %v701 = vadd.f32 %v587, %v589
        %702 = vadd.xlane.f32.xlu0 %v701
        %v703 = vpop.xlane.xlu0 %702
        %v704 = vadd.f32 %v591, %v593
        %705 = vadd.xlane.f32.xlu0 %v704
        %v706 = vpop.xlane.xlu0 %705
        %v707 = vadd.f32 %v597, %v599
        %708 = vadd.xlane.f32.xlu0 %v707
        %v709 = vpop.xlane.xlu0 %708
        %v710 = vadd.f32 %v601, %v603
        %711 = vadd.xlane.f32.xlu0 %v710
        %v712 = vpop.xlane.xlu0 %711
        %v713 = vadd.f32 %v607, %v609
        %714 = vadd.xlane.f32.xlu0 %v713
        %v715 = vpop.xlane.xlu0 %714
        %v716 = vadd.f32 %v611, %v613
        %717 = vadd.xlane.f32.xlu0 %v716
        %v718 = vpop.xlane.xlu0 %717
        %v719 = vadd.f32 %v617, %v619
        %720 = vadd.xlane.f32.xlu0 %v719
        %v721 = vpop.xlane.xlu0 %720
        %v722 = vadd.f32 %v621, %v623
        %723 = vadd.xlane.f32.xlu0 %v722
        %v724 = vpop.xlane.xlu0 %723
        %v725 = vadd.f32 %v627, %v629
        %726 = vadd.xlane.f32.xlu0 %v725
        %v727 = vpop.xlane.xlu0 %726
        %v728 = vadd.f32 %v631, %v633
        %729 = vadd.xlane.f32.xlu0 %v728
        %v730 = vpop.xlane.xlu0 %729
        %v731 = vmul.f32 %v637, 0.00390625
        %v732 = vmul.f32 %v640, 0.00390625
        %v733 = vmul.f32 %v643, 0.00390625
        %v734 = vmul.f32 %v646, 0.00390625
        %v735 = vmul.f32 %v649, 0.00390625
        %v736 = vmul.f32 %v652, 0.00390625
        %v737 = vmul.f32 %v655, 0.00390625
        %v738 = vmul.f32 %v658, 0.00390625
        %v739 = vmul.f32 %v661, 0.00390625
        %v740 = vmul.f32 %v664, 0.00390625
        %v741 = vmul.f32 %v667, 0.00390625
        %v742 = vmul.f32 %v670, 0.00390625
        %v743 = vmul.f32 %v673, 0.00390625
        %v744 = vmul.f32 %v676, 0.00390625
        %v745 = vmul.f32 %v679, 0.00390625
        %v746 = vmul.f32 %v682, 0.00390625
        %v747 = vmul.f32 %v685, 0.00390625
        %v748 = vmul.f32 %v688, 0.00390625
        %v749 = vmul.f32 %v691, 0.00390625
        %v750 = vmul.f32 %v694, 0.00390625
        %v751 = vmul.f32 %v697, 0.00390625
        %v752 = vmul.f32 %v700, 0.00390625
        %v753 = vmul.f32 %v703, 0.00390625
        %v754 = vmul.f32 %v706, 0.00390625
        %v755 = vmul.f32 %v709, 0.00390625
        %v756 = vmul.f32 %v712, 0.00390625
        %v757 = vmul.f32 %v715, 0.00390625
        %v758 = vmul.f32 %v718, 0.00390625
        %v759 = vmul.f32 %v721, 0.00390625
        %v760 = vmul.f32 %v724, 0.00390625
        %v761 = vmul.f32 %v727, 0.00390625
        %v762 = vmul.f32 %v730, 0.00390625
        %v763 = vsub.f32 %v477, %v731
        %v764 = vsub.f32 %v479, %v731
        %v765 = vsub.f32 %v481, %v732
        %v766 = vsub.f32 %v483, %v732
        %v767 = vsub.f32 %v487, %v733
        %v768 = vsub.f32 %v489, %v733
        %v769 = vsub.f32 %v491, %v734
        %v770 = vsub.f32 %v493, %v734
        %v771 = vsub.f32 %v497, %v735
        %v772 = vsub.f32 %v499, %v735
        %v773 = vsub.f32 %v501, %v736
        %v774 = vsub.f32 %v503, %v736
        %v775 = vsub.f32 %v507, %v737
        %v776 = vsub.f32 %v509, %v737
        %v777 = vsub.f32 %v511, %v738
        %v778 = vsub.f32 %v513, %v738
        %v779 = vsub.f32 %v517, %v739
        %v780 = vsub.f32 %v519, %v739
        %v781 = vsub.f32 %v521, %v740
        %v782 = vsub.f32 %v523, %v740
        %v783 = vsub.f32 %v527, %v741
        %v784 = vsub.f32 %v529, %v741
        %v785 = vsub.f32 %v531, %v742
        %v786 = vsub.f32 %v533, %v742
        %v787 = vsub.f32 %v537, %v743
        %v788 = vsub.f32 %v539, %v743
        %v789 = vsub.f32 %v541, %v744
        %v790 = vsub.f32 %v543, %v744
        %v791 = vsub.f32 %v547, %v745
        %v792 = vsub.f32 %v549, %v745
        %v793 = vsub.f32 %v551, %v746
        %v794 = vsub.f32 %v553, %v746
        %v795 = vsub.f32 %v557, %v747
        %v796 = vsub.f32 %v559, %v747
        %v797 = vsub.f32 %v561, %v748
        %v798 = vsub.f32 %v563, %v748
        %v799 = vsub.f32 %v567, %v749
        %v800 = vsub.f32 %v569, %v749
        %v801 = vsub.f32 %v571, %v750
        %v802 = vsub.f32 %v573, %v750
        %v803 = vsub.f32 %v577, %v751
        %v804 = vsub.f32 %v579, %v751
        %v805 = vsub.f32 %v581, %v752
        %v806 = vsub.f32 %v583, %v752
        %v807 = vsub.f32 %v587, %v753
        %v808 = vsub.f32 %v589, %v753
        %v809 = vsub.f32 %v591, %v754
        %v810 = vsub.f32 %v593, %v754
        %v811 = vsub.f32 %v597, %v755
        %v812 = vsub.f32 %v599, %v755
        %v813 = vsub.f32 %v601, %v756
        %v814 = vsub.f32 %v603, %v756
        %v815 = vsub.f32 %v607, %v757
        %v816 = vsub.f32 %v609, %v757
        %v817 = vsub.f32 %v611, %v758
        %v818 = vsub.f32 %v613, %v758
        %v819 = vsub.f32 %v617, %v759
        %v820 = vsub.f32 %v619, %v759
        %v821 = vsub.f32 %v621, %v760
        %v822 = vsub.f32 %v623, %v760
        %v823 = vsub.f32 %v627, %v761
        %v824 = vsub.f32 %v629, %v761
        %v825 = vsub.f32 %v631, %v762
        %v826 = vsub.f32 %v633, %v762
        %v827 = vmul.f32 %v763, %v763
        %v828 = vmul.f32 %v764, %v764
        %v829 = vmul.f32 %v765, %v765
        %v830 = vmul.f32 %v766, %v766
        %v831 = vmul.f32 %v767, %v767
        %v832 = vmul.f32 %v768, %v768
        %v833 = vmul.f32 %v769, %v769
        %v834 = vmul.f32 %v770, %v770
        %v835 = vmul.f32 %v771, %v771
        %v836 = vmul.f32 %v772, %v772
        %v837 = vmul.f32 %v773, %v773
        %v838 = vmul.f32 %v774, %v774
        %v839 = vmul.f32 %v775, %v775
        %v840 = vmul.f32 %v776, %v776
        %v841 = vmul.f32 %v777, %v777
        %v842 = vmul.f32 %v778, %v778
        %v843 = vmul.f32 %v779, %v779
        %v844 = vmul.f32 %v780, %v780
        %v845 = vmul.f32 %v781, %v781
        %v846 = vmul.f32 %v782, %v782
        %v847 = vmul.f32 %v783, %v783
        %v848 = vmul.f32 %v784, %v784
        %v849 = vmul.f32 %v785, %v785
        %v850 = vmul.f32 %v786, %v786
        %v851 = vmul.f32 %v787, %v787
        %v852 = vmul.f32 %v788, %v788
        %v853 = vmul.f32 %v789, %v789
        %v854 = vmul.f32 %v790, %v790
        %v855 = vmul.f32 %v791, %v791
        %v856 = vmul.f32 %v792, %v792
        %v857 = vmul.f32 %v793, %v793
        %v858 = vmul.f32 %v794, %v794
        %v859 = vmul.f32 %v795, %v795
        %v860 = vmul.f32 %v796, %v796
        %v861 = vmul.f32 %v797, %v797
        %v862 = vmul.f32 %v798, %v798
        %v863 = vmul.f32 %v799, %v799
        %v864 = vmul.f32 %v800, %v800
        %v865 = vmul.f32 %v801, %v801
        %v866 = vmul.f32 %v802, %v802
        %v867 = vmul.f32 %v803, %v803
        %v868 = vmul.f32 %v804, %v804
        %v869 = vmul.f32 %v805, %v805
        %v870 = vmul.f32 %v806, %v806
        %v871 = vmul.f32 %v807, %v807
        %v872 = vmul.f32 %v808, %v808
        %v873 = vmul.f32 %v809, %v809
        %v874 = vmul.f32 %v810, %v810
        %v875 = vmul.f32 %v811, %v811
        %v876 = vmul.f32 %v812, %v812
        %v877 = vmul.f32 %v813, %v813
        %v878 = vmul.f32 %v814, %v814
        %v879 = vmul.f32 %v815, %v815
        %v880 = vmul.f32 %v816, %v816
        %v881 = vmul.f32 %v817, %v817
        %v882 = vmul.f32 %v818, %v818
        %v883 = vmul.f32 %v819, %v819
        %v884 = vmul.f32 %v820, %v820
        %v885 = vmul.f32 %v821, %v821
        %v886 = vmul.f32 %v822, %v822
        %v887 = vmul.f32 %v823, %v823
        %v888 = vmul.f32 %v824, %v824
        %v889 = vmul.f32 %v825, %v825
        %v890 = vmul.f32 %v826, %v826
        %v891 = vadd.f32 %v827, %v828
        %892 = vadd.xlane.f32.xlu0 %v891
        %v893 = vpop.xlane.xlu0 %892
        %v894 = vadd.f32 %v829, %v830
        %895 = vadd.xlane.f32.xlu0 %v894
        %v896 = vpop.xlane.xlu0 %895
        %v897 = vadd.f32 %v831, %v832
        %898 = vadd.xlane.f32.xlu0 %v897
        %v899 = vpop.xlane.xlu0 %898
        %v900 = vadd.f32 %v833, %v834
        %901 = vadd.xlane.f32.xlu0 %v900
        %v902 = vpop.xlane.xlu0 %901
        %v903 = vadd.f32 %v835, %v836
        %904 = vadd.xlane.f32.xlu0 %v903
        %v905 = vpop.xlane.xlu0 %904
        %v906 = vadd.f32 %v837, %v838
        %907 = vadd.xlane.f32.xlu0 %v906
        %v908 = vpop.xlane.xlu0 %907
        %v909 = vadd.f32 %v839, %v840
        %910 = vadd.xlane.f32.xlu0 %v909
        %v911 = vpop.xlane.xlu0 %910
        %v912 = vadd.f32 %v841, %v842
        %913 = vadd.xlane.f32.xlu0 %v912
        %v914 = vpop.xlane.xlu0 %913
        %v915 = vadd.f32 %v843, %v844
        %916 = vadd.xlane.f32.xlu0 %v915
        %v917 = vpop.xlane.xlu0 %916
        %v918 = vadd.f32 %v845, %v846
        %919 = vadd.xlane.f32.xlu0 %v918
        %v920 = vpop.xlane.xlu0 %919
        %v921 = vadd.f32 %v847, %v848
        %922 = vadd.xlane.f32.xlu0 %v921
        %v923 = vpop.xlane.xlu0 %922
        %v924 = vadd.f32 %v849, %v850
        %925 = vadd.xlane.f32.xlu0 %v924
        %v926 = vpop.xlane.xlu0 %925
        %v927 = vadd.f32 %v851, %v852
        %928 = vadd.xlane.f32.xlu0 %v927
        %v929 = vpop.xlane.xlu0 %928
        %v930 = vadd.f32 %v853, %v854
        %931 = vadd.xlane.f32.xlu0 %v930
        %v932 = vpop.xlane.xlu0 %931
        %v933 = vadd.f32 %v855, %v856
        %934 = vadd.xlane.f32.xlu0 %v933
        %v935 = vpop.xlane.xlu0 %934
        %v936 = vadd.f32 %v857, %v858
        %937 = vadd.xlane.f32.xlu0 %v936
        %v938 = vpop.xlane.xlu0 %937
        %v939 = vadd.f32 %v859, %v860
        %940 = vadd.xlane.f32.xlu0 %v939
        %v941 = vpop.xlane.xlu0 %940
        %v942 = vadd.f32 %v861, %v862
        %943 = vadd.xlane.f32.xlu0 %v942
        %v944 = vpop.xlane.xlu0 %943
        %v945 = vadd.f32 %v863, %v864
        %946 = vadd.xlane.f32.xlu0 %v945
        %v947 = vpop.xlane.xlu0 %946
        %v948 = vadd.f32 %v865, %v866
        %949 = vadd.xlane.f32.xlu0 %v948
        %v950 = vpop.xlane.xlu0 %949
        %v951 = vadd.f32 %v867, %v868
        %952 = vadd.xlane.f32.xlu0 %v951
        %v953 = vpop.xlane.xlu0 %952
        %v954 = vadd.f32 %v869, %v870
        %955 = vadd.xlane.f32.xlu0 %v954
        %v956 = vpop.xlane.xlu0 %955
        %v957 = vadd.f32 %v871, %v872
        %958 = vadd.xlane.f32.xlu0 %v957
        %v959 = vpop.xlane.xlu0 %958
        %v960 = vadd.f32 %v873, %v874
        %961 = vadd.xlane.f32.xlu0 %v960
        %v962 = vpop.xlane.xlu0 %961
        %v963 = vadd.f32 %v875, %v876
        %964 = vadd.xlane.f32.xlu0 %v963
        %v965 = vpop.xlane.xlu0 %964
        %v966 = vadd.f32 %v877, %v878
        %967 = vadd.xlane.f32.xlu0 %v966
        %v968 = vpop.xlane.xlu0 %967
        %v969 = vadd.f32 %v879, %v880
        %970 = vadd.xlane.f32.xlu0 %v969
        %v971 = vpop.xlane.xlu0 %970
        %v972 = vadd.f32 %v881, %v882
        %973 = vadd.xlane.f32.xlu0 %v972
        %v974 = vpop.xlane.xlu0 %973
        %v975 = vadd.f32 %v883, %v884
        %976 = vadd.xlane.f32.xlu0 %v975
        %v977 = vpop.xlane.xlu0 %976
        %v978 = vadd.f32 %v885, %v886
        %979 = vadd.xlane.f32.xlu0 %v978
        %v980 = vpop.xlane.xlu0 %979
        %v981 = vadd.f32 %v887, %v888
        %982 = vadd.xlane.f32.xlu0 %v981
        %v983 = vpop.xlane.xlu0 %982
        %v984 = vadd.f32 %v889, %v890
        %985 = vadd.xlane.f32.xlu0 %v984
        %v986 = vpop.xlane.xlu0 %985
        %v987 = vmul.f32 %v893, 0.00390625
        %v988 = vmul.f32 %v896, 0.00390625
        %v989 = vmul.f32 %v899, 0.00390625
        %v990 = vmul.f32 %v902, 0.00390625
        %v991 = vmul.f32 %v905, 0.00390625
        %v992 = vmul.f32 %v908, 0.00390625
        %v993 = vmul.f32 %v911, 0.00390625
        %v994 = vmul.f32 %v914, 0.00390625
        %v995 = vmul.f32 %v917, 0.00390625
        %v996 = vmul.f32 %v920, 0.00390625
        %v997 = vmul.f32 %v923, 0.00390625
        %v998 = vmul.f32 %v926, 0.00390625
        %v999 = vmul.f32 %v929, 0.00390625
        %v1000 = vmul.f32 %v932, 0.00390625
        %v1001 = vmul.f32 %v935, 0.00390625
        %v1002 = vmul.f32 %v938, 0.00390625
        %v1003 = vmul.f32 %v941, 0.00390625
        %v1004 = vmul.f32 %v944, 0.00390625
        %v1005 = vmul.f32 %v947, 0.00390625
        %v1006 = vmul.f32 %v950, 0.00390625
        %v1007 = vmul.f32 %v953, 0.00390625
        %v1008 = vmul.f32 %v956, 0.00390625
        %v1009 = vmul.f32 %v959, 0.00390625
        %v1010 = vmul.f32 %v962, 0.00390625
        %v1011 = vmul.f32 %v965, 0.00390625
        %v1012 = vmul.f32 %v968, 0.00390625
        %v1013 = vmul.f32 %v971, 0.00390625
        %v1014 = vmul.f32 %v974, 0.00390625
        %v1015 = vmul.f32 %v977, 0.00390625
        %v1016 = vmul.f32 %v980, 0.00390625
        %v1017 = vmul.f32 %v983, 0.00390625
        %v1018 = vmul.f32 %v986, 0.00390625
        %v1019 = vadd.f32 %v987, 1e-05
        %v1020 = vadd.f32 %v988, 1e-05
        %v1021 = vadd.f32 %v989, 1e-05
        %v1022 = vadd.f32 %v990, 1e-05
        %v1023 = vadd.f32 %v991, 1e-05
        %v1024 = vadd.f32 %v992, 1e-05
        %v1025 = vadd.f32 %v993, 1e-05
        %v1026 = vadd.f32 %v994, 1e-05
        %v1027 = vadd.f32 %v995, 1e-05
        %v1028 = vadd.f32 %v996, 1e-05
        %v1029 = vadd.f32 %v997, 1e-05
        %v1030 = vadd.f32 %v998, 1e-05
        %v1031 = vadd.f32 %v999, 1e-05
        %v1032 = vadd.f32 %v1000, 1e-05
        %v1033 = vadd.f32 %v1001, 1e-05
        %v1034 = vadd.f32 %v1002, 1e-05
        %v1035 = vadd.f32 %v1003, 1e-05
        %v1036 = vadd.f32 %v1004, 1e-05
        %v1037 = vadd.f32 %v1005, 1e-05
        %v1038 = vadd.f32 %v1006, 1e-05
        %v1039 = vadd.f32 %v1007, 1e-05
        %v1040 = vadd.f32 %v1008, 1e-05
        %v1041 = vadd.f32 %v1009, 1e-05
        %v1042 = vadd.f32 %v1010, 1e-05
        %v1043 = vadd.f32 %v1011, 1e-05
        %v1044 = vadd.f32 %v1012, 1e-05
        %v1045 = vadd.f32 %v1013, 1e-05
        %v1046 = vadd.f32 %v1014, 1e-05
        %v1047 = vadd.f32 %v1015, 1e-05
        %v1048 = vadd.f32 %v1016, 1e-05
        %v1049 = vadd.f32 %v1017, 1e-05
        %v1050 = vadd.f32 %v1018, 1e-05
        %v1051 = vrsqrt.pop %v1019
        %v1052 = vrsqrt.pop %v1020
        %v1053 = vrsqrt.pop %v1021
        %v1054 = vrsqrt.pop %v1022
        %v1055 = vrsqrt.pop %v1023
        %v1056 = vrsqrt.pop %v1024
        %v1057 = vrsqrt.pop %v1025
        %v1058 = vrsqrt.pop %v1026
        %v1059 = vrsqrt.pop %v1027
        %v1060 = vrsqrt.pop %v1028
        %v1061 = vrsqrt.pop %v1029
        %v1062 = vrsqrt.pop %v1030
        %v1063 = vrsqrt.pop %v1031
        %v1064 = vrsqrt.pop %v1032
        %v1065 = vrsqrt.pop %v1033
        %v1066 = vrsqrt.pop %v1034
        %v1067 = vrsqrt.pop %v1035
        %v1068 = vrsqrt.pop %v1036
        %v1069 = vrsqrt.pop %v1037
        %v1070 = vrsqrt.pop %v1038
        %v1071 = vrsqrt.pop %v1039
        %v1072 = vrsqrt.pop %v1040
        %v1073 = vrsqrt.pop %v1041
        %v1074 = vrsqrt.pop %v1042
        %v1075 = vrsqrt.pop %v1043
        %v1076 = vrsqrt.pop %v1044
        %v1077 = vrsqrt.pop %v1045
        %v1078 = vrsqrt.pop %v1046
        %v1079 = vrsqrt.pop %v1047
        %v1080 = vrsqrt.pop %v1048
        %v1081 = vrsqrt.pop %v1049
        %v1082 = vrsqrt.pop %v1050
        %v1083 = vmul.f32 %v763, %v1051
        %v1084 = vmul.f32 %v764, %v1051
        %v1085 = vmul.f32 %v765, %v1052
        %v1086 = vmul.f32 %v766, %v1052
        %v1087 = vmul.f32 %v767, %v1053
        %v1088 = vmul.f32 %v768, %v1053
        %v1089 = vmul.f32 %v769, %v1054
        %v1090 = vmul.f32 %v770, %v1054
        %v1091 = vmul.f32 %v771, %v1055
        %v1092 = vmul.f32 %v772, %v1055
        %v1093 = vmul.f32 %v773, %v1056
        %v1094 = vmul.f32 %v774, %v1056
        %v1095 = vmul.f32 %v775, %v1057
        %v1096 = vmul.f32 %v776, %v1057
        %v1097 = vmul.f32 %v777, %v1058
        %v1098 = vmul.f32 %v778, %v1058
        %v1099 = vmul.f32 %v779, %v1059
        %v1100 = vmul.f32 %v780, %v1059
        %v1101 = vmul.f32 %v781, %v1060
        %v1102 = vmul.f32 %v782, %v1060
        %v1103 = vmul.f32 %v783, %v1061
        %v1104 = vmul.f32 %v784, %v1061
        %v1105 = vmul.f32 %v785, %v1062
        %v1106 = vmul.f32 %v786, %v1062
        %v1107 = vmul.f32 %v787, %v1063
        %v1108 = vmul.f32 %v788, %v1063
        %v1109 = vmul.f32 %v789, %v1064
        %v1110 = vmul.f32 %v790, %v1064
        %v1111 = vmul.f32 %v791, %v1065
        %v1112 = vmul.f32 %v792, %v1065
        %v1113 = vmul.f32 %v793, %v1066
        %v1114 = vmul.f32 %v794, %v1066
        %v1115 = vmul.f32 %v795, %v1067
        %v1116 = vmul.f32 %v796, %v1067
        %v1117 = vmul.f32 %v797, %v1068
        %v1118 = vmul.f32 %v798, %v1068
        %v1119 = vmul.f32 %v799, %v1069
        %v1120 = vmul.f32 %v800, %v1069
        %v1121 = vmul.f32 %v801, %v1070
        %v1122 = vmul.f32 %v802, %v1070
        %v1123 = vmul.f32 %v803, %v1071
        %v1124 = vmul.f32 %v804, %v1071
        %v1125 = vmul.f32 %v805, %v1072
        %v1126 = vmul.f32 %v806, %v1072
        %v1127 = vmul.f32 %v807, %v1073
        %v1128 = vmul.f32 %v808, %v1073
        %v1129 = vmul.f32 %v809, %v1074
        %v1130 = vmul.f32 %v810, %v1074
        %v1131 = vmul.f32 %v811, %v1075
        %v1132 = vmul.f32 %v812, %v1075
        %v1133 = vmul.f32 %v813, %v1076
        %v1134 = vmul.f32 %v814, %v1076
        %v1135 = vmul.f32 %v815, %v1077
        %v1136 = vmul.f32 %v816, %v1077
        %v1137 = vmul.f32 %v817, %v1078
        %v1138 = vmul.f32 %v818, %v1078
        %v1139 = vmul.f32 %v819, %v1079
        %v1140 = vmul.f32 %v820, %v1079
        %v1141 = vmul.f32 %v821, %v1080
        %v1142 = vmul.f32 %v822, %v1080
        %v1143 = vmul.f32 %v823, %v1081
        %v1144 = vmul.f32 %v824, %v1081
        %v1145 = vmul.f32 %v825, %v1082
        %v1146 = vmul.f32 %v826, %v1082
        %v1147 = vld [vmem:[%s3] sm:$0x3]
        %v1149 = vlaneseq
        %v1150 = vshrl.u32 %v1149, 7
        %v1151 = vsub.s32 0, %v1150
        %v1152 = vrot.slane %v1147, %v1151
        %v1153 = vlaneseq
        %v1154 = vshrl.u32 %v1153, 7
        %v1155 = vsub.s32 1, %v1154
        %v1156 = vrot.slane %v1147, %v1155
        %v1159 = vmul.f32 %v1083, %v1152
        %v1160 = vmul.f32 %v1084, %v1156
        %v1161 = vmul.f32 %v1085, %v1152
        %v1162 = vmul.f32 %v1086, %v1156
        %v1163 = vmul.f32 %v1087, %v1152
        %v1164 = vmul.f32 %v1088, %v1156
        %v1165 = vmul.f32 %v1089, %v1152
        %v1166 = vmul.f32 %v1090, %v1156
        %v1167 = vmul.f32 %v1091, %v1152
        %v1168 = vmul.f32 %v1092, %v1156
        %v1169 = vmul.f32 %v1093, %v1152
        %v1170 = vmul.f32 %v1094, %v1156
        %v1171 = vmul.f32 %v1095, %v1152
        %v1172 = vmul.f32 %v1096, %v1156
        %v1173 = vmul.f32 %v1097, %v1152
        %v1174 = vmul.f32 %v1098, %v1156
        %v1175 = vmul.f32 %v1099, %v1152
        %v1176 = vmul.f32 %v1100, %v1156
        %v1177 = vmul.f32 %v1101, %v1152
        %v1178 = vmul.f32 %v1102, %v1156
        %v1179 = vmul.f32 %v1103, %v1152
        %v1180 = vmul.f32 %v1104, %v1156
        %v1181 = vmul.f32 %v1105, %v1152
        %v1182 = vmul.f32 %v1106, %v1156
        %v1183 = vmul.f32 %v1107, %v1152
        %v1184 = vmul.f32 %v1108, %v1156
        %v1185 = vmul.f32 %v1109, %v1152
        %v1186 = vmul.f32 %v1110, %v1156
        %v1187 = vmul.f32 %v1111, %v1152
        %v1188 = vmul.f32 %v1112, %v1156
        %v1189 = vmul.f32 %v1113, %v1152
        %v1190 = vmul.f32 %v1114, %v1156
        %v1191 = vmul.f32 %v1115, %v1152
        %v1192 = vmul.f32 %v1116, %v1156
        %v1193 = vmul.f32 %v1117, %v1152
        %v1194 = vmul.f32 %v1118, %v1156
        %v1195 = vmul.f32 %v1119, %v1152
        %v1196 = vmul.f32 %v1120, %v1156
        %v1197 = vmul.f32 %v1121, %v1152
        %v1198 = vmul.f32 %v1122, %v1156
        %v1199 = vmul.f32 %v1123, %v1152
        %v1200 = vmul.f32 %v1124, %v1156
        %v1201 = vmul.f32 %v1125, %v1152
        %v1202 = vmul.f32 %v1126, %v1156
        %v1203 = vmul.f32 %v1127, %v1152
        %v1204 = vmul.f32 %v1128, %v1156
        %v1205 = vmul.f32 %v1129, %v1152
        %v1206 = vmul.f32 %v1130, %v1156
        %v1207 = vmul.f32 %v1131, %v1152
        %v1208 = vmul.f32 %v1132, %v1156
        %v1209 = vmul.f32 %v1133, %v1152
        %v1210 = vmul.f32 %v1134, %v1156
        %v1211 = vmul.f32 %v1135, %v1152
        %v1212 = vmul.f32 %v1136, %v1156
        %v1213 = vmul.f32 %v1137, %v1152
        %v1214 = vmul.f32 %v1138, %v1156
        %v1215 = vmul.f32 %v1139, %v1152
        %v1216 = vmul.f32 %v1140, %v1156
        %v1217 = vmul.f32 %v1141, %v1152
        %v1218 = vmul.f32 %v1142, %v1156
        %v1219 = vmul.f32 %v1143, %v1152
        %v1220 = vmul.f32 %v1144, %v1156
        %v1221 = vmul.f32 %v1145, %v1152
        %v1222 = vmul.f32 %v1146, %v1156
        %v1223 = vld [vmem:[%s4] sm:$0x3]
        %v1225 = vlaneseq
        %v1226 = vshrl.u32 %v1225, 7
        %v1227 = vsub.s32 0, %v1226
        %v1228 = vrot.slane %v1223, %v1227
        %v1229 = vlaneseq
        %v1230 = vshrl.u32 %v1229, 7
        %v1231 = vsub.s32 1, %v1230
        %v1232 = vrot.slane %v1223, %v1231
        %v1235 = vadd.f32 %v1159, %v1228
        %v1236 = vadd.f32 %v1160, %v1232
        %v1237 = vadd.f32 %v1161, %v1228
        %v1238 = vadd.f32 %v1162, %v1232
        %v1239 = vadd.f32 %v1163, %v1228
        %v1240 = vadd.f32 %v1164, %v1232
        %v1241 = vadd.f32 %v1165, %v1228
        %v1242 = vadd.f32 %v1166, %v1232
        %v1243 = vadd.f32 %v1167, %v1228
        %v1244 = vadd.f32 %v1168, %v1232
        %v1245 = vadd.f32 %v1169, %v1228
        %v1246 = vadd.f32 %v1170, %v1232
        %v1247 = vadd.f32 %v1171, %v1228
        %v1248 = vadd.f32 %v1172, %v1232
        %v1249 = vadd.f32 %v1173, %v1228
        %v1250 = vadd.f32 %v1174, %v1232
        %v1251 = vadd.f32 %v1175, %v1228
        %v1252 = vadd.f32 %v1176, %v1232
        %v1253 = vadd.f32 %v1177, %v1228
        %v1254 = vadd.f32 %v1178, %v1232
        %v1255 = vadd.f32 %v1179, %v1228
        %v1256 = vadd.f32 %v1180, %v1232
        %v1257 = vadd.f32 %v1181, %v1228
        %v1258 = vadd.f32 %v1182, %v1232
        %v1259 = vadd.f32 %v1183, %v1228
        %v1260 = vadd.f32 %v1184, %v1232
        %v1261 = vadd.f32 %v1185, %v1228
        %v1262 = vadd.f32 %v1186, %v1232
        %v1263 = vadd.f32 %v1187, %v1228
        %v1264 = vadd.f32 %v1188, %v1232
        %v1265 = vadd.f32 %v1189, %v1228
        %v1266 = vadd.f32 %v1190, %v1232
        %v1267 = vadd.f32 %v1191, %v1228
        %v1268 = vadd.f32 %v1192, %v1232
        %v1269 = vadd.f32 %v1193, %v1228
        %v1270 = vadd.f32 %v1194, %v1232
        %v1271 = vadd.f32 %v1195, %v1228
        %v1272 = vadd.f32 %v1196, %v1232
        %v1273 = vadd.f32 %v1197, %v1228
        %v1274 = vadd.f32 %v1198, %v1232
        %v1275 = vadd.f32 %v1199, %v1228
        %v1276 = vadd.f32 %v1200, %v1232
        %v1277 = vadd.f32 %v1201, %v1228
        %v1278 = vadd.f32 %v1202, %v1232
        %v1279 = vadd.f32 %v1203, %v1228
        %v1280 = vadd.f32 %v1204, %v1232
        %v1281 = vadd.f32 %v1205, %v1228
        %v1282 = vadd.f32 %v1206, %v1232
        %v1283 = vadd.f32 %v1207, %v1228
        %v1284 = vadd.f32 %v1208, %v1232
        %v1285 = vadd.f32 %v1209, %v1228
        %v1286 = vadd.f32 %v1210, %v1232
        %v1287 = vadd.f32 %v1211, %v1228
        %v1288 = vadd.f32 %v1212, %v1232
        %v1289 = vadd.f32 %v1213, %v1228
        %v1290 = vadd.f32 %v1214, %v1232
        %v1291 = vadd.f32 %v1215, %v1228
        %v1292 = vadd.f32 %v1216, %v1232
        %v1293 = vadd.f32 %v1217, %v1228
        %v1294 = vadd.f32 %v1218, %v1232
        %v1295 = vadd.f32 %v1219, %v1228
        %v1296 = vadd.f32 %v1220, %v1232
        %v1297 = vadd.f32 %v1221, %v1228
        %v1298 = vadd.f32 %v1222, %v1232
        %v1299 = vxor.u32 %v1235, 2147483648
        %v1300 = vxor.u32 %v1236, 2147483648
        %v1301 = vxor.u32 %v1237, 2147483648
        %v1302 = vxor.u32 %v1238, 2147483648
        %v1303 = vxor.u32 %v1239, 2147483648
        %v1304 = vxor.u32 %v1240, 2147483648
        %v1305 = vxor.u32 %v1241, 2147483648
        %v1306 = vxor.u32 %v1242, 2147483648
        %v1307 = vxor.u32 %v1243, 2147483648
        %v1308 = vxor.u32 %v1244, 2147483648
        %v1309 = vxor.u32 %v1245, 2147483648
        %v1310 = vxor.u32 %v1246, 2147483648
        %v1311 = vxor.u32 %v1247, 2147483648
        %v1312 = vxor.u32 %v1248, 2147483648
        %v1313 = vxor.u32 %v1249, 2147483648
        %v1314 = vxor.u32 %v1250, 2147483648
        %v1315 = vxor.u32 %v1251, 2147483648
        %v1316 = vxor.u32 %v1252, 2147483648
        %v1317 = vxor.u32 %v1253, 2147483648
        %v1318 = vxor.u32 %v1254, 2147483648
        %v1319 = vxor.u32 %v1255, 2147483648
        %v1320 = vxor.u32 %v1256, 2147483648
        %v1321 = vxor.u32 %v1257, 2147483648
        %v1322 = vxor.u32 %v1258, 2147483648
        %v1323 = vxor.u32 %v1259, 2147483648
        %v1324 = vxor.u32 %v1260, 2147483648
        %v1325 = vxor.u32 %v1261, 2147483648
        %v1326 = vxor.u32 %v1262, 2147483648
        %v1327 = vxor.u32 %v1263, 2147483648
        %v1328 = vxor.u32 %v1264, 2147483648
        %v1329 = vxor.u32 %v1265, 2147483648
        %v1330 = vxor.u32 %v1266, 2147483648
        %v1331 = vxor.u32 %v1267, 2147483648
        %v1332 = vxor.u32 %v1268, 2147483648
        %v1333 = vxor.u32 %v1269, 2147483648
        %v1334 = vxor.u32 %v1270, 2147483648
        %v1335 = vxor.u32 %v1271, 2147483648
        %v1336 = vxor.u32 %v1272, 2147483648
        %v1337 = vxor.u32 %v1273, 2147483648
        %v1338 = vxor.u32 %v1274, 2147483648
        %v1339 = vxor.u32 %v1275, 2147483648
        %v1340 = vxor.u32 %v1276, 2147483648
        %v1341 = vxor.u32 %v1277, 2147483648
        %v1342 = vxor.u32 %v1278, 2147483648
        %v1343 = vxor.u32 %v1279, 2147483648
        %v1344 = vxor.u32 %v1280, 2147483648
        %v1345 = vxor.u32 %v1281, 2147483648
        %v1346 = vxor.u32 %v1282, 2147483648
        %v1347 = vxor.u32 %v1283, 2147483648
        %v1348 = vxor.u32 %v1284, 2147483648
        %v1349 = vxor.u32 %v1285, 2147483648
        %v1350 = vxor.u32 %v1286, 2147483648
        %v1351 = vxor.u32 %v1287, 2147483648
        %v1352 = vxor.u32 %v1288, 2147483648
        %v1353 = vxor.u32 %v1289, 2147483648
        %v1354 = vxor.u32 %v1290, 2147483648
        %v1355 = vxor.u32 %v1291, 2147483648
        %v1356 = vxor.u32 %v1292, 2147483648
        %v1357 = vxor.u32 %v1293, 2147483648
        %v1358 = vxor.u32 %v1294, 2147483648
        %v1359 = vxor.u32 %v1295, 2147483648
        %v1360 = vxor.u32 %v1296, 2147483648
        %v1361 = vxor.u32 %v1297, 2147483648
        %v1362 = vxor.u32 %v1298, 2147483648
        %v1363 = vmul.f32 %v1299, 1.442695
        %v1364 = vpow.pop %v1363
        %v1365 = vmul.f32 %v1300, 1.442695
        %v1366 = vpow.pop %v1365
        %v1367 = vmul.f32 %v1301, 1.442695
        %v1368 = vpow.pop %v1367
        %v1369 = vmul.f32 %v1302, 1.442695
        %v1370 = vpow.pop %v1369
        %v1371 = vmul.f32 %v1303, 1.442695
        %v1372 = vpow.pop %v1371
        %v1373 = vmul.f32 %v1304, 1.442695
        %v1374 = vpow.pop %v1373
        %v1375 = vmul.f32 %v1305, 1.442695
        %v1376 = vpow.pop %v1375
        %v1377 = vmul.f32 %v1306, 1.442695
        %v1378 = vpow.pop %v1377
        %v1379 = vmul.f32 %v1307, 1.442695
        %v1380 = vpow.pop %v1379
        %v1381 = vmul.f32 %v1308, 1.442695
        %v1382 = vpow.pop %v1381
        %v1383 = vmul.f32 %v1309, 1.442695
        %v1384 = vpow.pop %v1383
        %v1385 = vmul.f32 %v1310, 1.442695
        %v1386 = vpow.pop %v1385
        %v1387 = vmul.f32 %v1311, 1.442695
        %v1388 = vpow.pop %v1387
        %v1389 = vmul.f32 %v1312, 1.442695
        %v1390 = vpow.pop %v1389
        %v1391 = vmul.f32 %v1313, 1.442695
        %v1392 = vpow.pop %v1391
        %v1393 = vmul.f32 %v1314, 1.442695
        %v1394 = vpow.pop %v1393
        %v1395 = vmul.f32 %v1315, 1.442695
        %v1396 = vpow.pop %v1395
        %v1397 = vmul.f32 %v1316, 1.442695
        %v1398 = vpow.pop %v1397
        %v1399 = vmul.f32 %v1317, 1.442695
        %v1400 = vpow.pop %v1399
        %v1401 = vmul.f32 %v1318, 1.442695
        %v1402 = vpow.pop %v1401
        %v1403 = vmul.f32 %v1319, 1.442695
        %v1404 = vpow.pop %v1403
        %v1405 = vmul.f32 %v1320, 1.442695
        %v1406 = vpow.pop %v1405
        %v1407 = vmul.f32 %v1321, 1.442695
        %v1408 = vpow.pop %v1407
        %v1409 = vmul.f32 %v1322, 1.442695
        %v1410 = vpow.pop %v1409
        %v1411 = vmul.f32 %v1323, 1.442695
        %v1412 = vpow.pop %v1411
        %v1413 = vmul.f32 %v1324, 1.442695
        %v1414 = vpow.pop %v1413
        %v1415 = vmul.f32 %v1325, 1.442695
        %v1416 = vpow.pop %v1415
        %v1417 = vmul.f32 %v1326, 1.442695
        %v1418 = vpow.pop %v1417
        %v1419 = vmul.f32 %v1327, 1.442695
        %v1420 = vpow.pop %v1419
        %v1421 = vmul.f32 %v1328, 1.442695
        %v1422 = vpow.pop %v1421
        %v1423 = vmul.f32 %v1329, 1.442695
        %v1424 = vpow.pop %v1423
        %v1425 = vmul.f32 %v1330, 1.442695
        %v1426 = vpow.pop %v1425
        %v1427 = vmul.f32 %v1331, 1.442695
        %v1428 = vpow.pop %v1427
        %v1429 = vmul.f32 %v1332, 1.442695
        %v1430 = vpow.pop %v1429
        %v1431 = vmul.f32 %v1333, 1.442695
        %v1432 = vpow.pop %v1431
        %v1433 = vmul.f32 %v1334, 1.442695
        %v1434 = vpow.pop %v1433
        %v1435 = vmul.f32 %v1335, 1.442695
        %v1436 = vpow.pop %v1435
        %v1437 = vmul.f32 %v1336, 1.442695
        %v1438 = vpow.pop %v1437
        %v1439 = vmul.f32 %v1337, 1.442695
        %v1440 = vpow.pop %v1439
        %v1441 = vmul.f32 %v1338, 1.442695
        %v1442 = vpow.pop %v1441
        %v1443 = vmul.f32 %v1339, 1.442695
        %v1444 = vpow.pop %v1443
        %v1445 = vmul.f32 %v1340, 1.442695
        %v1446 = vpow.pop %v1445
        %v1447 = vmul.f32 %v1341, 1.442695
        %v1448 = vpow.pop %v1447
        %v1449 = vmul.f32 %v1342, 1.442695
        %v1450 = vpow.pop %v1449
        %v1451 = vmul.f32 %v1343, 1.442695
        %v1452 = vpow.pop %v1451
        %v1453 = vmul.f32 %v1344, 1.442695
        %v1454 = vpow.pop %v1453
        %v1455 = vmul.f32 %v1345, 1.442695
        %v1456 = vpow.pop %v1455
        %v1457 = vmul.f32 %v1346, 1.442695
        %v1458 = vpow.pop %v1457
        %v1459 = vmul.f32 %v1347, 1.442695
        %v1460 = vpow.pop %v1459
        %v1461 = vmul.f32 %v1348, 1.442695
        %v1462 = vpow.pop %v1461
        %v1463 = vmul.f32 %v1349, 1.442695
        %v1464 = vpow.pop %v1463
        %v1465 = vmul.f32 %v1350, 1.442695
        %v1466 = vpow.pop %v1465
        %v1467 = vmul.f32 %v1351, 1.442695
        %v1468 = vpow.pop %v1467
        %v1469 = vmul.f32 %v1352, 1.442695
        %v1470 = vpow.pop %v1469
        %v1471 = vmul.f32 %v1353, 1.442695
        %v1472 = vpow.pop %v1471
        %v1473 = vmul.f32 %v1354, 1.442695
        %v1474 = vpow.pop %v1473
        %v1475 = vmul.f32 %v1355, 1.442695
        %v1476 = vpow.pop %v1475
        %v1477 = vmul.f32 %v1356, 1.442695
        %v1478 = vpow.pop %v1477
        %v1479 = vmul.f32 %v1357, 1.442695
        %v1480 = vpow.pop %v1479
        %v1481 = vmul.f32 %v1358, 1.442695
        %v1482 = vpow.pop %v1481
        %v1483 = vmul.f32 %v1359, 1.442695
        %v1484 = vpow.pop %v1483
        %v1485 = vmul.f32 %v1360, 1.442695
        %v1486 = vpow.pop %v1485
        %v1487 = vmul.f32 %v1361, 1.442695
        %v1488 = vpow.pop %v1487
        %v1489 = vmul.f32 %v1362, 1.442695
        %v1490 = vpow.pop %v1489
        %v1491 = vadd.f32 %v1364, 1.0
        %v1492 = vadd.f32 %v1366, 1.0
        %v1493 = vadd.f32 %v1368, 1.0
        %v1494 = vadd.f32 %v1370, 1.0
        %v1495 = vadd.f32 %v1372, 1.0
        %v1496 = vadd.f32 %v1374, 1.0
        %v1497 = vadd.f32 %v1376, 1.0
        %v1498 = vadd.f32 %v1378, 1.0
        %v1499 = vadd.f32 %v1380, 1.0
        %v1500 = vadd.f32 %v1382, 1.0
        %v1501 = vadd.f32 %v1384, 1.0
        %v1502 = vadd.f32 %v1386, 1.0
        %v1503 = vadd.f32 %v1388, 1.0
        %v1504 = vadd.f32 %v1390, 1.0
        %v1505 = vadd.f32 %v1392, 1.0
        %v1506 = vadd.f32 %v1394, 1.0
        %v1507 = vadd.f32 %v1396, 1.0
        %v1508 = vadd.f32 %v1398, 1.0
        %v1509 = vadd.f32 %v1400, 1.0
        %v1510 = vadd.f32 %v1402, 1.0
        %v1511 = vadd.f32 %v1404, 1.0
        %v1512 = vadd.f32 %v1406, 1.0
        %v1513 = vadd.f32 %v1408, 1.0
        %v1514 = vadd.f32 %v1410, 1.0
        %v1515 = vadd.f32 %v1412, 1.0
        %v1516 = vadd.f32 %v1414, 1.0
        %v1517 = vadd.f32 %v1416, 1.0
        %v1518 = vadd.f32 %v1418, 1.0
        %v1519 = vadd.f32 %v1420, 1.0
        %v1520 = vadd.f32 %v1422, 1.0
        %v1521 = vadd.f32 %v1424, 1.0
        %v1522 = vadd.f32 %v1426, 1.0
        %v1523 = vadd.f32 %v1428, 1.0
        %v1524 = vadd.f32 %v1430, 1.0
        %v1525 = vadd.f32 %v1432, 1.0
        %v1526 = vadd.f32 %v1434, 1.0
        %v1527 = vadd.f32 %v1436, 1.0
        %v1528 = vadd.f32 %v1438, 1.0
        %v1529 = vadd.f32 %v1440, 1.0
        %v1530 = vadd.f32 %v1442, 1.0
        %v1531 = vadd.f32 %v1444, 1.0
        %v1532 = vadd.f32 %v1446, 1.0
        %v1533 = vadd.f32 %v1448, 1.0
        %v1534 = vadd.f32 %v1450, 1.0
        %v1535 = vadd.f32 %v1452, 1.0
        %v1536 = vadd.f32 %v1454, 1.0
        %v1537 = vadd.f32 %v1456, 1.0
        %v1538 = vadd.f32 %v1458, 1.0
        %v1539 = vadd.f32 %v1460, 1.0
        %v1540 = vadd.f32 %v1462, 1.0
        %v1541 = vadd.f32 %v1464, 1.0
        %v1542 = vadd.f32 %v1466, 1.0
        %v1543 = vadd.f32 %v1468, 1.0
        %v1544 = vadd.f32 %v1470, 1.0
        %v1545 = vadd.f32 %v1472, 1.0
        %v1546 = vadd.f32 %v1474, 1.0
        %v1547 = vadd.f32 %v1476, 1.0
        %v1548 = vadd.f32 %v1478, 1.0
        %v1549 = vadd.f32 %v1480, 1.0
        %v1550 = vadd.f32 %v1482, 1.0
        %v1551 = vadd.f32 %v1484, 1.0
        %v1552 = vadd.f32 %v1486, 1.0
        %v1553 = vadd.f32 %v1488, 1.0
        %v1554 = vadd.f32 %v1490, 1.0
        %v1555 = vrcp.pop %v1491
        %v1556 = vmul.f32 1.0, %v1555
        %v1557 = vrcp.pop %v1492
        %v1558 = vmul.f32 1.0, %v1557
        %v1559 = vrcp.pop %v1493
        %v1560 = vmul.f32 1.0, %v1559
        %v1561 = vrcp.pop %v1494
        %v1562 = vmul.f32 1.0, %v1561
        %v1563 = vrcp.pop %v1495
        %v1564 = vmul.f32 1.0, %v1563
        %v1565 = vrcp.pop %v1496
        %v1566 = vmul.f32 1.0, %v1565
        %v1567 = vrcp.pop %v1497
        %v1568 = vmul.f32 1.0, %v1567
        %v1569 = vrcp.pop %v1498
        %v1570 = vmul.f32 1.0, %v1569
        %v1571 = vrcp.pop %v1499
        %v1572 = vmul.f32 1.0, %v1571
        %v1573 = vrcp.pop %v1500
        %v1574 = vmul.f32 1.0, %v1573
        %v1575 = vrcp.pop %v1501
        %v1576 = vmul.f32 1.0, %v1575
        %v1577 = vrcp.pop %v1502
        %v1578 = vmul.f32 1.0, %v1577
        %v1579 = vrcp.pop %v1503
        %v1580 = vmul.f32 1.0, %v1579
        %v1581 = vrcp.pop %v1504
        %v1582 = vmul.f32 1.0, %v1581
        %v1583 = vrcp.pop %v1505
        %v1584 = vmul.f32 1.0, %v1583
        %v1585 = vrcp.pop %v1506
        %v1586 = vmul.f32 1.0, %v1585
        %v1587 = vrcp.pop %v1507
        %v1588 = vmul.f32 1.0, %v1587
        %v1589 = vrcp.pop %v1508
        %v1590 = vmul.f32 1.0, %v1589
        %v1591 = vrcp.pop %v1509
        %v1592 = vmul.f32 1.0, %v1591
        %v1593 = vrcp.pop %v1510
        %v1594 = vmul.f32 1.0, %v1593
        %v1595 = vrcp.pop %v1511
        %v1596 = vmul.f32 1.0, %v1595
        %v1597 = vrcp.pop %v1512
        %v1598 = vmul.f32 1.0, %v1597
        %v1599 = vrcp.pop %v1513
        %v1600 = vmul.f32 1.0, %v1599
        %v1601 = vrcp.pop %v1514
        %v1602 = vmul.f32 1.0, %v1601
        %v1603 = vrcp.pop %v1515
        %v1604 = vmul.f32 1.0, %v1603
        %v1605 = vrcp.pop %v1516
        %v1606 = vmul.f32 1.0, %v1605
        %v1607 = vrcp.pop %v1517
        %v1608 = vmul.f32 1.0, %v1607
        %v1609 = vrcp.pop %v1518
        %v1610 = vmul.f32 1.0, %v1609
        %v1611 = vrcp.pop %v1519
        %v1612 = vmul.f32 1.0, %v1611
        %v1613 = vrcp.pop %v1520
        %v1614 = vmul.f32 1.0, %v1613
        %v1615 = vrcp.pop %v1521
        %v1616 = vmul.f32 1.0, %v1615
        %v1617 = vrcp.pop %v1522
        %v1618 = vmul.f32 1.0, %v1617
        %v1619 = vrcp.pop %v1523
        %v1620 = vmul.f32 1.0, %v1619
        %v1621 = vrcp.pop %v1524
        %v1622 = vmul.f32 1.0, %v1621
        %v1623 = vrcp.pop %v1525
        %v1624 = vmul.f32 1.0, %v1623
        %v1625 = vrcp.pop %v1526
        %v1626 = vmul.f32 1.0, %v1625
        %v1627 = vrcp.pop %v1527
        %v1628 = vmul.f32 1.0, %v1627
        %v1629 = vrcp.pop %v1528
        %v1630 = vmul.f32 1.0, %v1629
        %v1631 = vrcp.pop %v1529
        %v1632 = vmul.f32 1.0, %v1631
        %v1633 = vrcp.pop %v1530
        %v1634 = vmul.f32 1.0, %v1633
        %v1635 = vrcp.pop %v1531
        %v1636 = vmul.f32 1.0, %v1635
        %v1637 = vrcp.pop %v1532
        %v1638 = vmul.f32 1.0, %v1637
        %v1639 = vrcp.pop %v1533
        %v1640 = vmul.f32 1.0, %v1639
        %v1641 = vrcp.pop %v1534
        %v1642 = vmul.f32 1.0, %v1641
        %v1643 = vrcp.pop %v1535
        %v1644 = vmul.f32 1.0, %v1643
        %v1645 = vrcp.pop %v1536
        %v1646 = vmul.f32 1.0, %v1645
        %v1647 = vrcp.pop %v1537
        %v1648 = vmul.f32 1.0, %v1647
        %v1649 = vrcp.pop %v1538
        %v1650 = vmul.f32 1.0, %v1649
        %v1651 = vrcp.pop %v1539
        %v1652 = vmul.f32 1.0, %v1651
        %v1653 = vrcp.pop %v1540
        %v1654 = vmul.f32 1.0, %v1653
        %v1655 = vrcp.pop %v1541
        %v1656 = vmul.f32 1.0, %v1655
        %v1657 = vrcp.pop %v1542
        %v1658 = vmul.f32 1.0, %v1657
        %v1659 = vrcp.pop %v1543
        %v1660 = vmul.f32 1.0, %v1659
        %v1661 = vrcp.pop %v1544
        %v1662 = vmul.f32 1.0, %v1661
        %v1663 = vrcp.pop %v1545
        %v1664 = vmul.f32 1.0, %v1663
        %v1665 = vrcp.pop %v1546
        %v1666 = vmul.f32 1.0, %v1665
        %v1667 = vrcp.pop %v1547
        %v1668 = vmul.f32 1.0, %v1667
        %v1669 = vrcp.pop %v1548
        %v1670 = vmul.f32 1.0, %v1669
        %v1671 = vrcp.pop %v1549
        %v1672 = vmul.f32 1.0, %v1671
        %v1673 = vrcp.pop %v1550
        %v1674 = vmul.f32 1.0, %v1673
        %v1675 = vrcp.pop %v1551
        %v1676 = vmul.f32 1.0, %v1675
        %v1677 = vrcp.pop %v1552
        %v1678 = vmul.f32 1.0, %v1677
        %v1679 = vrcp.pop %v1553
        %v1680 = vmul.f32 1.0, %v1679
        %v1681 = vrcp.pop %v1554
        %v1682 = vmul.f32 1.0, %v1681
        %v1683 = vmul.f32 %v1235, %v1556
        %v1684 = vmul.f32 %v1236, %v1558
        %v1685 = vmul.f32 %v1237, %v1560
        %v1686 = vmul.f32 %v1238, %v1562
        %v1687 = vmul.f32 %v1239, %v1564
        %v1688 = vmul.f32 %v1240, %v1566
        %v1689 = vmul.f32 %v1241, %v1568
        %v1690 = vmul.f32 %v1242, %v1570
        %v1691 = vmul.f32 %v1243, %v1572
        %v1692 = vmul.f32 %v1244, %v1574
        %v1693 = vmul.f32 %v1245, %v1576
        %v1694 = vmul.f32 %v1246, %v1578
        %v1695 = vmul.f32 %v1247, %v1580
        %v1696 = vmul.f32 %v1248, %v1582
        %v1697 = vmul.f32 %v1249, %v1584
        %v1698 = vmul.f32 %v1250, %v1586
        %v1699 = vmul.f32 %v1251, %v1588
        %v1700 = vmul.f32 %v1252, %v1590
        %v1701 = vmul.f32 %v1253, %v1592
        %v1702 = vmul.f32 %v1254, %v1594
        %v1703 = vmul.f32 %v1255, %v1596
        %v1704 = vmul.f32 %v1256, %v1598
        %v1705 = vmul.f32 %v1257, %v1600
        %v1706 = vmul.f32 %v1258, %v1602
        %v1707 = vmul.f32 %v1259, %v1604
        %v1708 = vmul.f32 %v1260, %v1606
        %v1709 = vmul.f32 %v1261, %v1608
        %v1710 = vmul.f32 %v1262, %v1610
        %v1711 = vmul.f32 %v1263, %v1612
        %v1712 = vmul.f32 %v1264, %v1614
        %v1713 = vmul.f32 %v1265, %v1616
        %v1714 = vmul.f32 %v1266, %v1618
        %v1715 = vmul.f32 %v1267, %v1620
        %v1716 = vmul.f32 %v1268, %v1622
        %v1717 = vmul.f32 %v1269, %v1624
        %v1718 = vmul.f32 %v1270, %v1626
        %v1719 = vmul.f32 %v1271, %v1628
        %v1720 = vmul.f32 %v1272, %v1630
        %v1721 = vmul.f32 %v1273, %v1632
        %v1722 = vmul.f32 %v1274, %v1634
        %v1723 = vmul.f32 %v1275, %v1636
        %v1724 = vmul.f32 %v1276, %v1638
        %v1725 = vmul.f32 %v1277, %v1640
        %v1726 = vmul.f32 %v1278, %v1642
        %v1727 = vmul.f32 %v1279, %v1644
        %v1728 = vmul.f32 %v1280, %v1646
        %v1729 = vmul.f32 %v1281, %v1648
        %v1730 = vmul.f32 %v1282, %v1650
        %v1731 = vmul.f32 %v1283, %v1652
        %v1732 = vmul.f32 %v1284, %v1654
        %v1733 = vmul.f32 %v1285, %v1656
        %v1734 = vmul.f32 %v1286, %v1658
        %v1735 = vmul.f32 %v1287, %v1660
        %v1736 = vmul.f32 %v1288, %v1662
        %v1737 = vmul.f32 %v1289, %v1664
        %v1738 = vmul.f32 %v1290, %v1666
        %v1739 = vmul.f32 %v1291, %v1668
        %v1740 = vmul.f32 %v1292, %v1670
        %v1741 = vmul.f32 %v1293, %v1672
        %v1742 = vmul.f32 %v1294, %v1674
        %v1743 = vmul.f32 %v1295, %v1676
        %v1744 = vmul.f32 %v1296, %v1678
        %v1745 = vmul.f32 %v1297, %v1680
        %v1746 = vmul.f32 %v1298, %v1682
        %1747 = vst [vmem:[%s281] sm:$0xff] %v1683
        %1748 = vst [vmem:[%s281 + $0x8] sm:$0xff] %v1684
        %1749 = vst [vmem:[%s281 + $0x10] sm:$0xff] %v1685
        %1750 = vst [vmem:[%s281 + $0x18] sm:$0xff] %v1686
        %1751 = vst [vmem:[%s281 + $0x20] sm:$0xff] %v1687
        %1752 = vst [vmem:[%s281 + $0x28] sm:$0xff] %v1688
        %1753 = vst [vmem:[%s281 + $0x30] sm:$0xff] %v1689
        %1754 = vst [vmem:[%s281 + $0x38] sm:$0xff] %v1690
        %1755 = vst [vmem:[%s281 + $0x40] sm:$0xff] %v1691
        %1756 = vst [vmem:[%s281 + $0x48] sm:$0xff] %v1692
        %1757 = vst [vmem:[%s281 + $0x50] sm:$0xff] %v1693
        %1758 = vst [vmem:[%s281 + $0x58] sm:$0xff] %v1694
        %1759 = vst [vmem:[%s281 + $0x60] sm:$0xff] %v1695
        %1760 = vst [vmem:[%s281 + $0x68] sm:$0xff] %v1696
        %1761 = vst [vmem:[%s281 + $0x70] sm:$0xff] %v1697
        %1762 = vst [vmem:[%s281 + $0x78] sm:$0xff] %v1698
        %1763 = vst [vmem:[%s281 + $0x80] sm:$0xff] %v1699
        %1764 = vst [vmem:[%s281 + $0x88] sm:$0xff] %v1700
        %1765 = vst [vmem:[%s281 + $0x90] sm:$0xff] %v1701
        %1766 = vst [vmem:[%s281 + $0x98] sm:$0xff] %v1702
        %1767 = vst [vmem:[%s281 + $0xa0] sm:$0xff] %v1703
        %1768 = vst [vmem:[%s281 + $0xa8] sm:$0xff] %v1704
        %1769 = vst [vmem:[%s281 + $0xb0] sm:$0xff] %v1705
        %1770 = vst [vmem:[%s281 + $0xb8] sm:$0xff] %v1706
        %1771 = vst [vmem:[%s281 + $0xc0] sm:$0xff] %v1707
        %1772 = vst [vmem:[%s281 + $0xc8] sm:$0xff] %v1708
        %1773 = vst [vmem:[%s281 + $0xd0] sm:$0xff] %v1709
        %1774 = vst [vmem:[%s281 + $0xd8] sm:$0xff] %v1710
        %1775 = vst [vmem:[%s281 + $0xe0] sm:$0xff] %v1711
        %1776 = vst [vmem:[%s281 + $0xe8] sm:$0xff] %v1712
        %1777 = vst [vmem:[%s281 + $0xf0] sm:$0xff] %v1713
        %1778 = vst [vmem:[%s281 + $0xf8] sm:$0xff] %v1714
        %1779 = vst [vmem:[%s281 + $0x100] sm:$0xff] %v1715
        %1780 = vst [vmem:[%s281 + $0x108] sm:$0xff] %v1716
        %1781 = vst [vmem:[%s281 + $0x110] sm:$0xff] %v1717
        %1782 = vst [vmem:[%s281 + $0x118] sm:$0xff] %v1718
        %1783 = vst [vmem:[%s281 + $0x120] sm:$0xff] %v1719
        %1784 = vst [vmem:[%s281 + $0x128] sm:$0xff] %v1720
        %1785 = vst [vmem:[%s281 + $0x130] sm:$0xff] %v1721
        %1786 = vst [vmem:[%s281 + $0x138] sm:$0xff] %v1722
        %1787 = vst [vmem:[%s281 + $0x140] sm:$0xff] %v1723
        %1788 = vst [vmem:[%s281 + $0x148] sm:$0xff] %v1724
        %1789 = vst [vmem:[%s281 + $0x150] sm:$0xff] %v1725
        %1790 = vst [vmem:[%s281 + $0x158] sm:$0xff] %v1726
        %1791 = vst [vmem:[%s281 + $0x160] sm:$0xff] %v1727
        %1792 = vst [vmem:[%s281 + $0x168] sm:$0xff] %v1728
        %1793 = vst [vmem:[%s281 + $0x170] sm:$0xff] %v1729
        %1794 = vst [vmem:[%s281 + $0x178] sm:$0xff] %v1730
        %1795 = vst [vmem:[%s281 + $0x180] sm:$0xff] %v1731
        %1796 = vst [vmem:[%s281 + $0x188] sm:$0xff] %v1732
        %1797 = vst [vmem:[%s281 + $0x190] sm:$0xff] %v1733
        %1798 = vst [vmem:[%s281 + $0x198] sm:$0xff] %v1734
        %1799 = vst [vmem:[%s281 + $0x1a0] sm:$0xff] %v1735
        %1800 = vst [vmem:[%s281 + $0x1a8] sm:$0xff] %v1736
        %1801 = vst [vmem:[%s281 + $0x1b0] sm:$0xff] %v1737
        %1802 = vst [vmem:[%s281 + $0x1b8] sm:$0xff] %v1738
        %1803 = vst [vmem:[%s281 + $0x1c0] sm:$0xff] %v1739
        %1804 = vst [vmem:[%s281 + $0x1c8] sm:$0xff] %v1740
        %1805 = vst [vmem:[%s281 + $0x1d0] sm:$0xff] %v1741
        %1806 = vst [vmem:[%s281 + $0x1d8] sm:$0xff] %v1742
        %1807 = vst [vmem:[%s281 + $0x1e0] sm:$0xff] %v1743
        %1808 = vst [vmem:[%s281 + $0x1e8] sm:$0xff] %v1744
        %1809 = vst [vmem:[%s281 + $0x1f0] sm:$0xff] %v1745
        %1810 = vst [vmem:[%s281 + $0x1f8] sm:$0xff] %v1746
        %s1811 = sand.u32 %s160, 1
        %s1812 = scalar_lea.sflag [#allocation4], %s1811
        %s1813 = sand.u32 %s160, 1
        %s1814 = smul.addr %s1813, 512
        %s1815 = scalar_lea.vmem [#allocation7], %s1814
        // Predicated region
        $region49: #{tpu_custom_call.1} parent=39 // pred_check
          %p1816 = pneg %p170
        $region50: #{tpu_custom_call.1} parent=39 // pred_check_branch
          %1818 = sbr.rel (%p1816) target = $region52
        $region51: #{tpu_custom_call.1} parent=39 // pred_region
          %s1819 = smul.u32 32, %s27
          %s1821 = ssub.s32 8192, 8192
          %1822 = vsyncadd %s1812, %s1821
          %s1823 = smul.addr %s1819, 2
          %s1824 = smul.addr %s1823, 128
          %s1825 = scalar_lea.hbm %s5, %s1824
          %s1826 = sshll.u32 %s1815, 4
          %s1827 = int_to_ptr.vmem [resolvable:$true] %s1826
          %1832 = dma.vmem_to_hbm [thread:$0]  %s1827, 8192, %s1825, %s1812, 256, 256, 16
        $region52: #{tpu_custom_call.1} parent=39 // pred_fallthru
          _
      $region40: #{tpu_custom_call.1} parent=5 // pred_fallthru
        _
      %p1833 = scmp.le.s32.totalorder 2, %s18
      // Predicated region
      $region53: #{tpu_custom_call.1} parent=5 // pred_check
        %p1834 = pneg %p1833
      $region54: #{tpu_custom_call.1} parent=5 // pred_check_branch
        %1836 = sbr.rel (%p1834) target = $region56
      $region55: #{tpu_custom_call.1} parent=5 // pred_region
        %s1837 = ssub.s32 %s18, 2
        // Predicated region
        $region57: #{tpu_custom_call.1} parent=55 // pred_check
          %p1838 = pneg %p176
        $region58: #{tpu_custom_call.1} parent=55 // pred_check_branch
          %1840 = sbr.rel (%p1838) target = $region60
        $region59: #{tpu_custom_call.1} parent=55 // pred_region
          %s1841 = sand.u32 %s161, 1
          %s1842 = scalar_lea.sflag [#allocation4], %s1841
          %s1843 = sand.u32 %s161, 1
          %s1844 = smul.addr %s1843, 512
          %s1845 = scalar_lea.vmem [#allocation7], %s1844
          %1846 = dma.done %s1842, 8192
        $region60: #{tpu_custom_call.1} parent=55 // pred_fallthru
          _
      $region56: #{tpu_custom_call.1} parent=5 // pred_fallthru
        _
    $region6: #{tpu_custom_call.1} parent=1 // loop_footer
      %s22 = sadd.s32 1, %s18
    $region7: #{tpu_custom_call.1} parent=1 // loop_footer_branch
      %17 = sbr.rel target = $region3
    $region8: #{tpu_custom_call.1} parent=1 // loop_exit
      _
    %1847 = vsyncpa [#allocation3], 1
    %s1848 = scalar_lea.sflag [#allocation3], 1
    %1849 = vsyncpa %s1848, 1
    %1850 = vsyncpa [#allocation6], 1
    %1851 = vsyncpa [#allocation4], 1
    %s1852 = scalar_lea.sflag [#allocation4], 1
    %1853 = vsyncpa %s1852, 1

</llo_original>
